<compile_context>
chip_gen: v6e
topology: v6e:2x2x1
jax: 0.10.0
libtpu: 0.0.40
codegen_flags: <defaults>
</compile_context>

<pallas_src>
import functools

import jax
import jax.numpy as jnp
from jax import lax
from jax.experimental import pallas as pl
from jax.experimental.pallas import tpu as pltpu


# ----------------------------------------------------------------------------
# Fused Pallas kernel: all LSTM layers + FC on last timestep
# ----------------------------------------------------------------------------
def fused_lstm_fc_kernel(gx0_ref, wih_ref, whh_ref, b_ref, fcw_ref, fcb_ref, out_ref,
                         seq_sc, gx_sc, *, num_layers, hidden_size, seq_len, batch):
    """Fused multi-layer LSTM + Linear-on-last-timestep.

    gx0_ref: (T*B, 4H) f32  precomputed layer-0 input gates (embedding folded with
                            W_ih0 + b0); rows [t*B:(t+1)*B] belong to timestep t.
    wih_ref: (L-1, H, 4H)   input->hidden weights for layers 1..L-1 (pre-transposed)
    whh_ref: (L, H, 4H)     hidden->hidden weights for all layers (pre-transposed)
    b_ref:   (L-1, 1, 4H)   combined biases (b_ih + b_hh) for layers 1..L-1
    fcw_ref: (H, O)         final linear weight (pre-transposed)
    fcb_ref: (1, O)         final linear bias
    out_ref: (B, O)         output
    seq_sc:  (T*B, H) VMEM  inter-layer hidden sequence (rewritten in place per layer)
    gx_sc:   (T*B, 4H) VMEM hoisted input-projection gates for layers >= 1
    """
    T, B, H = seq_len, batch, hidden_size
    G = 4 * H

    # Loop-invariant lane mask: gate g (index 2) uses tanh, gates i/f/o use sigmoid.
    lane = lax.broadcasted_iota(jnp.int32, (B, G), dimension=1)
    is_g_lane = (lane >= 2 * H) & (lane < 3 * H)

    def run_layer(gx_ref, whh_l, write_seq):
        def step(t, carry):
            h, c = carry
            # Serial critical path per step: one (B,H) x (H,4H) recurrent matmul.
            gates = gx_ref[pl.ds(t * B, B), :] + jnp.dot(
                h, whh_l, preferred_element_type=jnp.float32)
            # Full-vreg activation, then static slices only for the combine.
            act = jnp.where(is_g_lane, jnp.tanh(gates), jax.nn.sigmoid(gates))
            i_g = act[:, 0 * H:1 * H]
            f_g = act[:, 1 * H:2 * H]
            g_g = act[:, 2 * H:3 * H]
            o_g = act[:, 3 * H:4 * H]
            c_new = f_g * c + i_g * g_g
            h_new = o_g * jnp.tanh(c_new)
            if write_seq:                                 # static (Python) flag
                seq_sc[pl.ds(t * B, B), :] = h_new
            return (h_new, c_new)

        zeros = jnp.zeros((B, H), jnp.float32)
        h_last, _ = lax.fori_loop(0, T, step, (zeros, zeros), unroll=True)
        return h_last

    h_last = None
    for layer in range(num_layers):                       # static Python loop
        is_last = layer == num_layers - 1
        if layer == 0:
            gx_ref = gx0_ref                              # precomputed in the wrapper
        else:
            # Hoisted input projection for this layer: one big MXU matmul over all T,
            # bias folded in once (not per step).
            gx_sc[...] = (
                jnp.dot(seq_sc[...], wih_ref[layer - 1],
                        preferred_element_type=jnp.float32)
                + b_ref[layer - 1]
            )
            gx_ref = gx_sc
        whh_l = whh_ref[layer]                            # hoisted out of the time loop
        h_last = run_layer(gx_ref, whh_l, write_seq=not is_last)

    # Fused FC on the last timestep's hidden state only (no (T,B,H) HBM writeback).
    out_ref[...] = (
        jnp.dot(h_last, fcw_ref[...], preferred_element_type=jnp.float32) + fcb_ref[...]
    )


# ----------------------------------------------------------------------------
# Wrapper
# ----------------------------------------------------------------------------
def _vmem_spec():
    return pl.BlockSpec(memory_space=pltpu.MemorySpace.VMEM)


@functools.partial(jax.jit, static_argnames=("num_layers",))
def cpg_predictor_forward(x_ids, params, *, num_layers):
    B, T = x_ids.shape
    w_ih0, w_hh0, b0 = params["lstm"][0]
    H = w_hh0.shape[0]
    O = params["fc_w"].shape[1]

    # Fold embedding + layer-0 input projection + bias into a (5, 4H) table (vocab = 5);
    # the layer-0 input gates then become a pure gather on the token ids (plain-JAX glue).
    table = params["embedding"] @ w_ih0 + b0                          # (5, 4H)
    gx0 = jnp.take(table, x_ids, axis=0)                              # (B, T, 4H)
    gx0 = jnp.transpose(gx0, (1, 0, 2)).reshape(T * B, 4 * H)         # time-major, flat
    gx0 = gx0.astype(jnp.float32)

    whh = jnp.stack([params["lstm"][l][1] for l in range(num_layers)])          # (L,H,4H)
    if num_layers > 1:
        wih_rest = jnp.stack([params["lstm"][l][0] for l in range(1, num_layers)])
        b_rest = jnp.stack([params["lstm"][l][2] for l in range(1, num_layers)])
    else:  # dummies, never read inside the kernel
        wih_rest = jnp.zeros((1, H, 4 * H), jnp.float32)
        b_rest = jnp.zeros((1, 1, 4 * H), jnp.float32)

    kernel = functools.partial(
        fused_lstm_fc_kernel,
        num_layers=num_layers, hidden_size=H, seq_len=T, batch=B)

    return pl.pallas_call(
        kernel,
        out_shape=jax.ShapeDtypeStruct((B, O), jnp.float32),
        in_specs=[_vmem_spec()] * 6,
        out_specs=_vmem_spec(),
        scratch_shapes=[
            pltpu.VMEM((T * B, H), jnp.float32),        # inter-layer sequence (resident)
            pltpu.VMEM((T * B, 4 * H), jnp.float32),    # hoisted input gates, layers >= 1
        ],
    )(gx0, wih_rest, whh, b_rest, params["fc_w"], params["fc_b"])


# ----------------------------------------------------------------------------
# Deterministic parameter init (PyTorch-style uniform(-1/sqrt(H), 1/sqrt(H)))
# ----------------------------------------------------------------------------
def init_params(key, input_size, hidden_size, num_layers, output_size):
    ks = iter(jax.random.split(key, 4 + 6 * num_layers))
    bound = 1.0 / jnp.sqrt(jnp.float32(hidden_size))

    params = {
        "embedding": jax.random.normal(next(ks), (5, input_size), jnp.float32),
        "lstm": [],
    }
    for layer in range(num_layers):
        d_in = input_size if layer == 0 else hidden_size
        w_ih = jax.random.uniform(next(ks), (d_in, 4 * hidden_size), jnp.float32,
                                  -bound, bound)
        w_hh = jax.random.uniform(next(ks), (hidden_size, 4 * hidden_size), jnp.float32,
                                  -bound, bound)
        b_ih = jax.random.uniform(next(ks), (4 * hidden_size,), jnp.float32, -bound, bound)
        b_hh = jax.random.uniform(next(ks), (4 * hidden_size,), jnp.float32, -bound, bound)
        params["lstm"].append((w_ih, w_hh, (b_ih + b_hh)[None, :]))
    params["fc_w"] = jax.random.uniform(next(ks), (hidden_size, output_size), jnp.float32,
                                        -bound, bound)
    params["fc_b"] = jax.random.uniform(next(ks), (1, output_size), jnp.float32,
                                        -bound, bound)
    return params


# ----------------------------------------------------------------------------
# Pure-JAX reference (correctness check only)
# ----------------------------------------------------------------------------
def reference_forward(x_ids, params, num_layers):
    x = jnp.take(params["embedding"], x_ids, axis=0)          # (B, T, D)
    x = jnp.transpose(x, (1, 0, 2))                           # (T, B, D)
    for layer in range(num_layers):
        w_ih, w_hh, bias = params["lstm"][layer]
        H = w_hh.shape[0]
        B = x.shape[1]

        def step(carry, x_t):
            h, c = carry
            g = x_t @ w_ih + h @ w_hh + bias
            i = jax.nn.sigmoid(g[:, 0 * H:1 * H])
            f = jax.nn.sigmoid(g[:, 1 * H:2 * H])
            gg = jnp.tanh(g[:, 2 * H:3 * H])
            o = jax.nn.sigmoid(g[:, 3 * H:4 * H])
            c = f * c + i * gg
            h = o * jnp.tanh(c)
            return (h, c), h

        init = (jnp.zeros((B, H), jnp.float32), jnp.zeros((B, H), jnp.float32))
        _, x = lax.scan(step, init, x)
    return x[-1] @ params["fc_w"] + params["fc_b"]


# ----------------------------------------------------------------------------
if __name__ == "__main__":
    input_size, hidden_size, num_layers, output_size = 16, 32, 2, 1
    batch, seq_len = 2, 8

    key = jax.random.PRNGKey(0)
    k_ids, k_params = jax.random.split(key)

    x_ids = jax.random.randint(k_ids, (batch, seq_len), 0, 5, dtype=jnp.int32)
    params = init_params(k_params, input_size, hidden_size, num_layers, output_size)

    out = cpg_predictor_forward(x_ids, params, num_layers=num_layers)
    out = jax.block_until_ready(out)

    ref = reference_forward(x_ids, params, num_layers)
    assert out.shape == (batch, output_size)
    assert jnp.allclose(out, ref, atol=1e-4, rtol=1e-4)

    print("KERNEL_OK")
</pallas_src>

<mosaic_0001>
module attributes {stable_mosaic.version = 11 : i64} {
  func.func @fused_lstm_fc_kernel(%arg0: memref<16x128xf32, #tpu.memory_space<vmem>>, %arg1: memref<1x32x128xf32, #tpu.memory_space<vmem>>, %arg2: memref<2x32x128xf32, #tpu.memory_space<vmem>>, %arg3: memref<1x1x128xf32, #tpu.memory_space<vmem>>, %arg4: memref<32x1xf32, #tpu.memory_space<vmem>>, %arg5: memref<1x1xf32, #tpu.memory_space<vmem>>, %arg6: memref<2x1xf32, #tpu.memory_space<vmem>>, %arg7: memref<16x32xf32, #tpu.memory_space<vmem>>, %arg8: memref<16x128xf32, #tpu.memory_space<vmem>>) attributes {dimension_semantics = [], scalar_prefetch = 0 : i64, scratch_operands = 2 : i64, tpu.core_type = #tpu.core_type<tc>} {
    %0 = tpu.iota {dimensions = array<i32: 1>} : vector<2x128xi32>
    %c64_i32 = arith.constant 64 : i32
    %1 = vector.broadcast %c64_i32 : i32 to vector<2x128xi32>
    %2 = arith.cmpi sge, %0, %1 : vector<2x128xi32>
    %c96_i32 = arith.constant 96 : i32
    %3 = vector.broadcast %c96_i32 : i32 to vector<2x128xi32>
    %4 = arith.cmpi slt, %0, %3 : vector<2x128xi32>
    %5 = arith.andi %2, %4 : vector<2x128xi1>
    %c0 = arith.constant 0 : index
    %c0_0 = arith.constant 0 : index
    %c0_1 = arith.constant 0 : index
    %6 = vector.load %arg2[%c0, %c0_0, %c0_1] : memref<2x32x128xf32, #tpu.memory_space<vmem>>, vector<1x32x128xf32>
    %7 = vector.shape_cast %6 : vector<1x32x128xf32> to vector<32x128xf32>
    %cst = arith.constant 0.000000e+00 : f32
    %8 = vector.broadcast %cst : f32 to vector<2x32xf32>
    %c0_i32 = arith.constant 0 : i32
    %c2_i32 = arith.constant 2 : i32
    %9 = arith.muli %c0_i32, %c2_i32 : i32
    %10 = arith.index_cast %9 : i32 to index
    %c0_2 = arith.constant 0 : index
    %11 = vector.load %arg0[%10, %c0_2] : memref<16x128xf32, #tpu.memory_space<vmem>>, vector<2x128xf32>
    %cst_3 = arith.constant dense<0.000000e+00> : vector<2x128xf32>
    %12 = tpu.matmul %8, %7, %cst_3 {dimension_numbers = #tpu.dot_dimension_numbers<[1], [0], [0], [1], [0, 0, 1, 1], [], []>} : vector<2x32xf32>, vector<32x128xf32>, vector<2x128xf32> -> vector<2x128xf32>
    %13 = arith.addf %11, %12 : vector<2x128xf32>
    %14 = math.tanh %13 : vector<2x128xf32>
    %15 = arith.negf %13 : vector<2x128xf32>
    %16 = math.exp %15 : vector<2x128xf32>
    %cst_4 = arith.constant 1.000000e+00 : f32
    %17 = vector.broadcast %cst_4 : f32 to vector<2x128xf32>
    %18 = arith.addf %17, %16 : vector<2x128xf32>
    %19 = arith.divf %17, %18 : vector<2x128xf32>
    %20 = arith.select %5, %14, %19 : vector<2x128xi1>, vector<2x128xf32>
    %21 = vector.extract_strided_slice %20 {offsets = [0, 0], sizes = [2, 32], strides = [1, 1]} : vector<2x128xf32> to vector<2x32xf32>
    %22 = vector.extract_strided_slice %20 {offsets = [0, 32], sizes = [2, 32], strides = [1, 1]} : vector<2x128xf32> to vector<2x32xf32>
    %23 = vector.extract_strided_slice %20 {offsets = [0, 64], sizes = [2, 32], strides = [1, 1]} : vector<2x128xf32> to vector<2x32xf32>
    %24 = vector.extract_strided_slice %20 {offsets = [0, 96], sizes = [2, 32], strides = [1, 1]} : vector<2x128xf32> to vector<2x32xf32>
    %25 = arith.mulf %22, %8 : vector<2x32xf32>
    %26 = arith.mulf %21, %23 : vector<2x32xf32>
    %27 = arith.addf %25, %26 : vector<2x32xf32>
    %28 = math.tanh %27 : vector<2x32xf32>
    %29 = arith.mulf %24, %28 : vector<2x32xf32>
    %c2_i32_5 = arith.constant 2 : i32
    %30 = arith.muli %c0_i32, %c2_i32_5 : i32
    %31 = arith.index_cast %30 : i32 to index
    %c0_6 = arith.constant 0 : index
    %32 = vector.load %arg7[%31, %c0_6] : memref<16x32xf32, #tpu.memory_space<vmem>>, vector<2x32xf32>
    tpu.vector_store %arg7[%31, %c0_6], %29 {strides = array<i32>} : memref<16x32xf32, #tpu.memory_space<vmem>>, vector<2x32xf32>,
    %c1_i32 = arith.constant 1 : i32
    %c2_i32_7 = arith.constant 2 : i32
    %33 = arith.muli %c1_i32, %c2_i32_7 : i32
    %34 = arith.index_cast %33 : i32 to index
    %c0_8 = arith.constant 0 : index
    %35 = vector.load %arg0[%34, %c0_8] : memref<16x128xf32, #tpu.memory_space<vmem>>, vector<2x128xf32>
    %cst_9 = arith.constant dense<0.000000e+00> : vector<2x128xf32>
    %36 = tpu.matmul %29, %7, %cst_9 {dimension_numbers = #tpu.dot_dimension_numbers<[1], [0], [0], [1], [0, 0, 1, 1], [], []>} : vector<2x32xf32>, vector<32x128xf32>, vector<2x128xf32> -> vector<2x128xf32>
    %37 = arith.addf %35, %36 : vector<2x128xf32>
    %38 = math.tanh %37 : vector<2x128xf32>
    %39 = arith.negf %37 : vector<2x128xf32>
    %40 = math.exp %39 : vector<2x128xf32>
    %cst_10 = arith.constant 1.000000e+00 : f32
    %41 = vector.broadcast %cst_10 : f32 to vector<2x128xf32>
    %42 = arith.addf %41, %40 : vector<2x128xf32>
    %43 = arith.divf %41, %42 : vector<2x128xf32>
    %44 = arith.select %5, %38, %43 : vector<2x128xi1>, vector<2x128xf32>
    %45 = vector.extract_strided_slice %44 {offsets = [0, 0], sizes = [2, 32], strides = [1, 1]} : vector<2x128xf32> to vector<2x32xf32>
    %46 = vector.extract_strided_slice %44 {offsets = [0, 32], sizes = [2, 32], strides = [1, 1]} : vector<2x128xf32> to vector<2x32xf32>
    %47 = vector.extract_strided_slice %44 {offsets = [0, 64], sizes = [2, 32], strides = [1, 1]} : vector<2x128xf32> to vector<2x32xf32>
    %48 = vector.extract_strided_slice %44 {offsets = [0, 96], sizes = [2, 32], strides = [1, 1]} : vector<2x128xf32> to vector<2x32xf32>
    %49 = arith.mulf %46, %27 : vector<2x32xf32>
    %50 = arith.mulf %45, %47 : vector<2x32xf32>
    %51 = arith.addf %49, %50 : vector<2x32xf32>
    %52 = math.tanh %51 : vector<2x32xf32>
    %53 = arith.mulf %48, %52 : vector<2x32xf32>
    %c2_i32_11 = arith.constant 2 : i32
    %54 = arith.muli %c1_i32, %c2_i32_11 : i32
    %55 = arith.index_cast %54 : i32 to index
    %c0_12 = arith.constant 0 : index
    %56 = vector.load %arg7[%55, %c0_12] : memref<16x32xf32, #tpu.memory_space<vmem>>, vector<2x32xf32>
    tpu.vector_store %arg7[%55, %c0_12], %53 {strides = array<i32>} : memref<16x32xf32, #tpu.memory_space<vmem>>, vector<2x32xf32>,
    %c2_i32_13 = arith.constant 2 : i32
    %c2_i32_14 = arith.constant 2 : i32
    %57 = arith.muli %c2_i32_13, %c2_i32_14 : i32
    %58 = arith.index_cast %57 : i32 to index
    %c0_15 = arith.constant 0 : index
    %59 = vector.load %arg0[%58, %c0_15] : memref<16x128xf32, #tpu.memory_space<vmem>>, vector<2x128xf32>
    %cst_16 = arith.constant dense<0.000000e+00> : vector<2x128xf32>
    %60 = tpu.matmul %53, %7, %cst_16 {dimension_numbers = #tpu.dot_dimension_numbers<[1], [0], [0], [1], [0, 0, 1, 1], [], []>} : vector<2x32xf32>, vector<32x128xf32>, vector<2x128xf32> -> vector<2x128xf32>
    %61 = arith.addf %59, %60 : vector<2x128xf32>
    %62 = math.tanh %61 : vector<2x128xf32>
    %63 = arith.negf %61 : vector<2x128xf32>
    %64 = math.exp %63 : vector<2x128xf32>
    %cst_17 = arith.constant 1.000000e+00 : f32
    %65 = vector.broadcast %cst_17 : f32 to vector<2x128xf32>
    %66 = arith.addf %65, %64 : vector<2x128xf32>
    %67 = arith.divf %65, %66 : vector<2x128xf32>
    %68 = arith.select %5, %62, %67 : vector<2x128xi1>, vector<2x128xf32>
    %69 = vector.extract_strided_slice %68 {offsets = [0, 0], sizes = [2, 32], strides = [1, 1]} : vector<2x128xf32> to vector<2x32xf32>
    %70 = vector.extract_strided_slice %68 {offsets = [0, 32], sizes = [2, 32], strides = [1, 1]} : vector<2x128xf32> to vector<2x32xf32>
    %71 = vector.extract_strided_slice %68 {offsets = [0, 64], sizes = [2, 32], strides = [1, 1]} : vector<2x128xf32> to vector<2x32xf32>
    %72 = vector.extract_strided_slice %68 {offsets = [0, 96], sizes = [2, 32], strides = [1, 1]} : vector<2x128xf32> to vector<2x32xf32>
    %73 = arith.mulf %70, %51 : vector<2x32xf32>
    %74 = arith.mulf %69, %71 : vector<2x32xf32>
    %75 = arith.addf %73, %74 : vector<2x32xf32>
    %76 = math.tanh %75 : vector<2x32xf32>
    %77 = arith.mulf %72, %76 : vector<2x32xf32>
    %c2_i32_18 = arith.constant 2 : i32
    %78 = arith.muli %c2_i32_13, %c2_i32_18 : i32
    %79 = arith.index_cast %78 : i32 to index
    %c0_19 = arith.constant 0 : index
    %80 = vector.load %arg7[%79, %c0_19] : memref<16x32xf32, #tpu.memory_space<vmem>>, vector<2x32xf32>
    tpu.vector_store %arg7[%79, %c0_19], %77 {strides = array<i32>} : memref<16x32xf32, #tpu.memory_space<vmem>>, vector<2x32xf32>,
    %c3_i32 = arith.constant 3 : i32
    %c2_i32_20 = arith.constant 2 : i32
    %81 = arith.muli %c3_i32, %c2_i32_20 : i32
    %82 = arith.index_cast %81 : i32 to index
    %c0_21 = arith.constant 0 : index
    %83 = vector.load %arg0[%82, %c0_21] : memref<16x128xf32, #tpu.memory_space<vmem>>, vector<2x128xf32>
    %cst_22 = arith.constant dense<0.000000e+00> : vector<2x128xf32>
    %84 = tpu.matmul %77, %7, %cst_22 {dimension_numbers = #tpu.dot_dimension_numbers<[1], [0], [0], [1], [0, 0, 1, 1], [], []>} : vector<2x32xf32>, vector<32x128xf32>, vector<2x128xf32> -> vector<2x128xf32>
    %85 = arith.addf %83, %84 : vector<2x128xf32>
    %86 = math.tanh %85 : vector<2x128xf32>
    %87 = arith.negf %85 : vector<2x128xf32>
    %88 = math.exp %87 : vector<2x128xf32>
    %cst_23 = arith.constant 1.000000e+00 : f32
    %89 = vector.broadcast %cst_23 : f32 to vector<2x128xf32>
    %90 = arith.addf %89, %88 : vector<2x128xf32>
    %91 = arith.divf %89, %90 : vector<2x128xf32>
    %92 = arith.select %5, %86, %91 : vector<2x128xi1>, vector<2x128xf32>
    %93 = vector.extract_strided_slice %92 {offsets = [0, 0], sizes = [2, 32], strides = [1, 1]} : vector<2x128xf32> to vector<2x32xf32>
    %94 = vector.extract_strided_slice %92 {offsets = [0, 32], sizes = [2, 32], strides = [1, 1]} : vector<2x128xf32> to vector<2x32xf32>
    %95 = vector.extract_strided_slice %92 {offsets = [0, 64], sizes = [2, 32], strides = [1, 1]} : vector<2x128xf32> to vector<2x32xf32>
    %96 = vector.extract_strided_slice %92 {offsets = [0, 96], sizes = [2, 32], strides = [1, 1]} : vector<2x128xf32> to vector<2x32xf32>
    %97 = arith.mulf %94, %75 : vector<2x32xf32>
    %98 = arith.mulf %93, %95 : vector<2x32xf32>
    %99 = arith.addf %97, %98 : vector<2x32xf32>
    %100 = math.tanh %99 : vector<2x32xf32>
    %101 = arith.mulf %96, %100 : vector<2x32xf32>
    %c2_i32_24 = arith.constant 2 : i32
    %102 = arith.muli %c3_i32, %c2_i32_24 : i32
    %103 = arith.index_cast %102 : i32 to index
    %c0_25 = arith.constant 0 : index
    %104 = vector.load %arg7[%103, %c0_25] : memref<16x32xf32, #tpu.memory_space<vmem>>, vector<2x32xf32>
    tpu.vector_store %arg7[%103, %c0_25], %101 {strides = array<i32>} : memref<16x32xf32, #tpu.memory_space<vmem>>, vector<2x32xf32>,
    %c4_i32 = arith.constant 4 : i32
    %c2_i32_26 = arith.constant 2 : i32
    %105 = arith.muli %c4_i32, %c2_i32_26 : i32
    %106 = arith.index_cast %105 : i32 to index
    %c0_27 = arith.constant 0 : index
    %107 = vector.load %arg0[%106, %c0_27] : memref<16x128xf32, #tpu.memory_space<vmem>>, vector<2x128xf32>
    %cst_28 = arith.constant dense<0.000000e+00> : vector<2x128xf32>
    %108 = tpu.matmul %101, %7, %cst_28 {dimension_numbers = #tpu.dot_dimension_numbers<[1], [0], [0], [1], [0, 0, 1, 1], [], []>} : vector<2x32xf32>, vector<32x128xf32>, vector<2x128xf32> -> vector<2x128xf32>
    %109 = arith.addf %107, %108 : vector<2x128xf32>
    %110 = math.tanh %109 : vector<2x128xf32>
    %111 = arith.negf %109 : vector<2x128xf32>
    %112 = math.exp %111 : vector<2x128xf32>
    %cst_29 = arith.constant 1.000000e+00 : f32
    %113 = vector.broadcast %cst_29 : f32 to vector<2x128xf32>
    %114 = arith.addf %113, %112 : vector<2x128xf32>
    %115 = arith.divf %113, %114 : vector<2x128xf32>
    %116 = arith.select %5, %110, %115 : vector<2x128xi1>, vector<2x128xf32>
    %117 = vector.extract_strided_slice %116 {offsets = [0, 0], sizes = [2, 32], strides = [1, 1]} : vector<2x128xf32> to vector<2x32xf32>
    %118 = vector.extract_strided_slice %116 {offsets = [0, 32], sizes = [2, 32], strides = [1, 1]} : vector<2x128xf32> to vector<2x32xf32>
    %119 = vector.extract_strided_slice %116 {offsets = [0, 64], sizes = [2, 32], strides = [1, 1]} : vector<2x128xf32> to vector<2x32xf32>
    %120 = vector.extract_strided_slice %116 {offsets = [0, 96], sizes = [2, 32], strides = [1, 1]} : vector<2x128xf32> to vector<2x32xf32>
    %121 = arith.mulf %118, %99 : vector<2x32xf32>
    %122 = arith.mulf %117, %119 : vector<2x32xf32>
    %123 = arith.addf %121, %122 : vector<2x32xf32>
    %124 = math.tanh %123 : vector<2x32xf32>
    %125 = arith.mulf %120, %124 : vector<2x32xf32>
    %c2_i32_30 = arith.constant 2 : i32
    %126 = arith.muli %c4_i32, %c2_i32_30 : i32
    %127 = arith.index_cast %126 : i32 to index
    %c0_31 = arith.constant 0 : index
    %128 = vector.load %arg7[%127, %c0_31] : memref<16x32xf32, #tpu.memory_space<vmem>>, vector<2x32xf32>
    tpu.vector_store %arg7[%127, %c0_31], %125 {strides = array<i32>} : memref<16x32xf32, #tpu.memory_space<vmem>>, vector<2x32xf32>,
    %c5_i32 = arith.constant 5 : i32
    %c2_i32_32 = arith.constant 2 : i32
    %129 = arith.muli %c5_i32, %c2_i32_32 : i32
    %130 = arith.index_cast %129 : i32 to index
    %c0_33 = arith.constant 0 : index
    %131 = vector.load %arg0[%130, %c0_33] : memref<16x128xf32, #tpu.memory_space<vmem>>, vector<2x128xf32>
    %cst_34 = arith.constant dense<0.000000e+00> : vector<2x128xf32>
    %132 = tpu.matmul %125, %7, %cst_34 {dimension_numbers = #tpu.dot_dimension_numbers<[1], [0], [0], [1], [0, 0, 1, 1], [], []>} : vector<2x32xf32>, vector<32x128xf32>, vector<2x128xf32> -> vector<2x128xf32>
    %133 = arith.addf %131, %132 : vector<2x128xf32>
    %134 = math.tanh %133 : vector<2x128xf32>
    %135 = arith.negf %133 : vector<2x128xf32>
    %136 = math.exp %135 : vector<2x128xf32>
    %cst_35 = arith.constant 1.000000e+00 : f32
    %137 = vector.broadcast %cst_35 : f32 to vector<2x128xf32>
    %138 = arith.addf %137, %136 : vector<2x128xf32>
    %139 = arith.divf %137, %138 : vector<2x128xf32>
    %140 = arith.select %5, %134, %139 : vector<2x128xi1>, vector<2x128xf32>
    %141 = vector.extract_strided_slice %140 {offsets = [0, 0], sizes = [2, 32], strides = [1, 1]} : vector<2x128xf32> to vector<2x32xf32>
    %142 = vector.extract_strided_slice %140 {offsets = [0, 32], sizes = [2, 32], strides = [1, 1]} : vector<2x128xf32> to vector<2x32xf32>
    %143 = vector.extract_strided_slice %140 {offsets = [0, 64], sizes = [2, 32], strides = [1, 1]} : vector<2x128xf32> to vector<2x32xf32>
    %144 = vector.extract_strided_slice %140 {offsets = [0, 96], sizes = [2, 32], strides = [1, 1]} : vector<2x128xf32> to vector<2x32xf32>
    %145 = arith.mulf %142, %123 : vector<2x32xf32>
    %146 = arith.mulf %141, %143 : vector<2x32xf32>
    %147 = arith.addf %145, %146 : vector<2x32xf32>
    %148 = math.tanh %147 : vector<2x32xf32>
    %149 = arith.mulf %144, %148 : vector<2x32xf32>
    %c2_i32_36 = arith.constant 2 : i32
    %150 = arith.muli %c5_i32, %c2_i32_36 : i32
    %151 = arith.index_cast %150 : i32 to index
    %c0_37 = arith.constant 0 : index
    %152 = vector.load %arg7[%151, %c0_37] : memref<16x32xf32, #tpu.memory_space<vmem>>, vector<2x32xf32>
    tpu.vector_store %arg7[%151, %c0_37], %149 {strides = array<i32>} : memref<16x32xf32, #tpu.memory_space<vmem>>, vector<2x32xf32>,
    %c6_i32 = arith.constant 6 : i32
    %c2_i32_38 = arith.constant 2 : i32
    %153 = arith.muli %c6_i32, %c2_i32_38 : i32
    %154 = arith.index_cast %153 : i32 to index
    %c0_39 = arith.constant 0 : index
    %155 = vector.load %arg0[%154, %c0_39] : memref<16x128xf32, #tpu.memory_space<vmem>>, vector<2x128xf32>
    %cst_40 = arith.constant dense<0.000000e+00> : vector<2x128xf32>
    %156 = tpu.matmul %149, %7, %cst_40 {dimension_numbers = #tpu.dot_dimension_numbers<[1], [0], [0], [1], [0, 0, 1, 1], [], []>} : vector<2x32xf32>, vector<32x128xf32>, vector<2x128xf32> -> vector<2x128xf32>
    %157 = arith.addf %155, %156 : vector<2x128xf32>
    %158 = math.tanh %157 : vector<2x128xf32>
    %159 = arith.negf %157 : vector<2x128xf32>
    %160 = math.exp %159 : vector<2x128xf32>
    %cst_41 = arith.constant 1.000000e+00 : f32
    %161 = vector.broadcast %cst_41 : f32 to vector<2x128xf32>
    %162 = arith.addf %161, %160 : vector<2x128xf32>
    %163 = arith.divf %161, %162 : vector<2x128xf32>
    %164 = arith.select %5, %158, %163 : vector<2x128xi1>, vector<2x128xf32>
    %165 = vector.extract_strided_slice %164 {offsets = [0, 0], sizes = [2, 32], strides = [1, 1]} : vector<2x128xf32> to vector<2x32xf32>
    %166 = vector.extract_strided_slice %164 {offsets = [0, 32], sizes = [2, 32], strides = [1, 1]} : vector<2x128xf32> to vector<2x32xf32>
    %167 = vector.extract_strided_slice %164 {offsets = [0, 64], sizes = [2, 32], strides = [1, 1]} : vector<2x128xf32> to vector<2x32xf32>
    %168 = vector.extract_strided_slice %164 {offsets = [0, 96], sizes = [2, 32], strides = [1, 1]} : vector<2x128xf32> to vector<2x32xf32>
    %169 = arith.mulf %166, %147 : vector<2x32xf32>
    %170 = arith.mulf %165, %167 : vector<2x32xf32>
    %171 = arith.addf %169, %170 : vector<2x32xf32>
    %172 = math.tanh %171 : vector<2x32xf32>
    %173 = arith.mulf %168, %172 : vector<2x32xf32>
    %c2_i32_42 = arith.constant 2 : i32
    %174 = arith.muli %c6_i32, %c2_i32_42 : i32
    %175 = arith.index_cast %174 : i32 to index
    %c0_43 = arith.constant 0 : index
    %176 = vector.load %arg7[%175, %c0_43] : memref<16x32xf32, #tpu.memory_space<vmem>>, vector<2x32xf32>
    tpu.vector_store %arg7[%175, %c0_43], %173 {strides = array<i32>} : memref<16x32xf32, #tpu.memory_space<vmem>>, vector<2x32xf32>,
    %c7_i32 = arith.constant 7 : i32
    %c2_i32_44 = arith.constant 2 : i32
    %177 = arith.muli %c7_i32, %c2_i32_44 : i32
    %178 = arith.index_cast %177 : i32 to index
    %c0_45 = arith.constant 0 : index
    %179 = vector.load %arg0[%178, %c0_45] : memref<16x128xf32, #tpu.memory_space<vmem>>, vector<2x128xf32>
    %cst_46 = arith.constant dense<0.000000e+00> : vector<2x128xf32>
    %180 = tpu.matmul %173, %7, %cst_46 {dimension_numbers = #tpu.dot_dimension_numbers<[1], [0], [0], [1], [0, 0, 1, 1], [], []>} : vector<2x32xf32>, vector<32x128xf32>, vector<2x128xf32> -> vector<2x128xf32>
    %181 = arith.addf %179, %180 : vector<2x128xf32>
    %182 = math.tanh %181 : vector<2x128xf32>
    %183 = arith.negf %181 : vector<2x128xf32>
    %184 = math.exp %183 : vector<2x128xf32>
    %cst_47 = arith.constant 1.000000e+00 : f32
    %185 = vector.broadcast %cst_47 : f32 to vector<2x128xf32>
    %186 = arith.addf %185, %184 : vector<2x128xf32>
    %187 = arith.divf %185, %186 : vector<2x128xf32>
    %188 = arith.select %5, %182, %187 : vector<2x128xi1>, vector<2x128xf32>
    %189 = vector.extract_strided_slice %188 {offsets = [0, 0], sizes = [2, 32], strides = [1, 1]} : vector<2x128xf32> to vector<2x32xf32>
    %190 = vector.extract_strided_slice %188 {offsets = [0, 32], sizes = [2, 32], strides = [1, 1]} : vector<2x128xf32> to vector<2x32xf32>
    %191 = vector.extract_strided_slice %188 {offsets = [0, 64], sizes = [2, 32], strides = [1, 1]} : vector<2x128xf32> to vector<2x32xf32>
    %192 = vector.extract_strided_slice %188 {offsets = [0, 96], sizes = [2, 32], strides = [1, 1]} : vector<2x128xf32> to vector<2x32xf32>
    %193 = arith.mulf %190, %171 : vector<2x32xf32>
    %194 = arith.mulf %189, %191 : vector<2x32xf32>
    %195 = arith.addf %193, %194 : vector<2x32xf32>
    %196 = math.tanh %195 : vector<2x32xf32>
    %197 = arith.mulf %192, %196 : vector<2x32xf32>
    %c2_i32_48 = arith.constant 2 : i32
    %198 = arith.muli %c7_i32, %c2_i32_48 : i32
    %199 = arith.index_cast %198 : i32 to index
    %c0_49 = arith.constant 0 : index
    %200 = vector.load %arg7[%199, %c0_49] : memref<16x32xf32, #tpu.memory_space<vmem>>, vector<2x32xf32>
    tpu.vector_store %arg7[%199, %c0_49], %197 {strides = array<i32>} : memref<16x32xf32, #tpu.memory_space<vmem>>, vector<2x32xf32>,
    %c8_i32 = arith.constant 8 : i32
    %c0_50 = arith.constant 0 : index
    %c0_51 = arith.constant 0 : index
    %201 = vector.load %arg7[%c0_50, %c0_51] : memref<16x32xf32, #tpu.memory_space<vmem>>, vector<16x32xf32>
    %c0_52 = arith.constant 0 : index
    %c0_53 = arith.constant 0 : index
    %c0_54 = arith.constant 0 : index
    %202 = vector.load %arg1[%c0_52, %c0_53, %c0_54] : memref<1x32x128xf32, #tpu.memory_space<vmem>>, vector<1x32x128xf32>
    %203 = vector.shape_cast %202 : vector<1x32x128xf32> to vector<32x128xf32>
    %cst_55 = arith.constant dense<0.000000e+00> : vector<16x128xf32>
    %204 = tpu.matmul %201, %203, %cst_55 {dimension_numbers = #tpu.dot_dimension_numbers<[1], [0], [0], [1], [0, 0, 1, 1], [], []>} : vector<16x32xf32>, vector<32x128xf32>, vector<16x128xf32> -> vector<16x128xf32>
    %c0_56 = arith.constant 0 : index
    %c0_57 = arith.constant 0 : index
    %c0_58 = arith.constant 0 : index
    %205 = vector.load %arg3[%c0_56, %c0_57, %c0_58] : memref<1x1x128xf32, #tpu.memory_space<vmem>>, vector<1x1x128xf32>
    %206 = vector.shape_cast %205 : vector<1x1x128xf32> to vector<1x128xf32>
    %207 = vector.broadcast %206 : vector<1x128xf32> to vector<16x128xf32>
    %208 = arith.addf %204, %207 : vector<16x128xf32>
    %c0_59 = arith.constant 0 : index
    %c0_60 = arith.constant 0 : index
    %209 = vector.load %arg8[%c0_59, %c0_60] : memref<16x128xf32, #tpu.memory_space<vmem>>, vector<16x128xf32>
    tpu.vector_store %arg8[%c0_59, %c0_60], %208 {strides = array<i32>} : memref<16x128xf32, #tpu.memory_space<vmem>>, vector<16x128xf32>,
    %c1 = arith.constant 1 : index
    %c0_61 = arith.constant 0 : index
    %c0_62 = arith.constant 0 : index
    %210 = vector.load %arg2[%c1, %c0_61, %c0_62] : memref<2x32x128xf32, #tpu.memory_space<vmem>>, vector<1x32x128xf32>
    %211 = vector.shape_cast %210 : vector<1x32x128xf32> to vector<32x128xf32>
    %cst_63 = arith.constant 0.000000e+00 : f32
    %212 = vector.broadcast %cst_63 : f32 to vector<2x32xf32>
    %c0_i32_64 = arith.constant 0 : i32
    %c2_i32_65 = arith.constant 2 : i32
    %213 = arith.muli %c0_i32_64, %c2_i32_65 : i32
    %214 = arith.index_cast %213 : i32 to index
    %c0_66 = arith.constant 0 : index
    %215 = vector.load %arg8[%214, %c0_66] : memref<16x128xf32, #tpu.memory_space<vmem>>, vector<2x128xf32>
    %cst_67 = arith.constant dense<0.000000e+00> : vector<2x128xf32>
    %216 = tpu.matmul %212, %211, %cst_67 {dimension_numbers = #tpu.dot_dimension_numbers<[1], [0], [0], [1], [0, 0, 1, 1], [], []>} : vector<2x32xf32>, vector<32x128xf32>, vector<2x128xf32> -> vector<2x128xf32>
    %217 = arith.addf %215, %216 : vector<2x128xf32>
    %218 = math.tanh %217 : vector<2x128xf32>
    %219 = arith.negf %217 : vector<2x128xf32>
    %220 = math.exp %219 : vector<2x128xf32>
    %cst_68 = arith.constant 1.000000e+00 : f32
    %221 = vector.broadcast %cst_68 : f32 to vector<2x128xf32>
    %222 = arith.addf %221, %220 : vector<2x128xf32>
    %223 = arith.divf %221, %222 : vector<2x128xf32>
    %224 = arith.select %5, %218, %223 : vector<2x128xi1>, vector<2x128xf32>
    %225 = vector.extract_strided_slice %224 {offsets = [0, 0], sizes = [2, 32], strides = [1, 1]} : vector<2x128xf32> to vector<2x32xf32>
    %226 = vector.extract_strided_slice %224 {offsets = [0, 32], sizes = [2, 32], strides = [1, 1]} : vector<2x128xf32> to vector<2x32xf32>
    %227 = vector.extract_strided_slice %224 {offsets = [0, 64], sizes = [2, 32], strides = [1, 1]} : vector<2x128xf32> to vector<2x32xf32>
    %228 = vector.extract_strided_slice %224 {offsets = [0, 96], sizes = [2, 32], strides = [1, 1]} : vector<2x128xf32> to vector<2x32xf32>
    %229 = arith.mulf %226, %212 : vector<2x32xf32>
    %230 = arith.mulf %225, %227 : vector<2x32xf32>
    %231 = arith.addf %229, %230 : vector<2x32xf32>
    %232 = math.tanh %231 : vector<2x32xf32>
    %233 = arith.mulf %228, %232 : vector<2x32xf32>
    %c1_i32_69 = arith.constant 1 : i32
    %c2_i32_70 = arith.constant 2 : i32
    %234 = arith.muli %c1_i32_69, %c2_i32_70 : i32
    %235 = arith.index_cast %234 : i32 to index
    %c0_71 = arith.constant 0 : index
    %236 = vector.load %arg8[%235, %c0_71] : memref<16x128xf32, #tpu.memory_space<vmem>>, vector<2x128xf32>
    %cst_72 = arith.constant dense<0.000000e+00> : vector<2x128xf32>
    %237 = tpu.matmul %233, %211, %cst_72 {dimension_numbers = #tpu.dot_dimension_numbers<[1], [0], [0], [1], [0, 0, 1, 1], [], []>} : vector<2x32xf32>, vector<32x128xf32>, vector<2x128xf32> -> vector<2x128xf32>
    %238 = arith.addf %236, %237 : vector<2x128xf32>
    %239 = math.tanh %238 : vector<2x128xf32>
    %240 = arith.negf %238 : vector<2x128xf32>
    %241 = math.exp %240 : vector<2x128xf32>
    %cst_73 = arith.constant 1.000000e+00 : f32
    %242 = vector.broadcast %cst_73 : f32 to vector<2x128xf32>
    %243 = arith.addf %242, %241 : vector<2x128xf32>
    %244 = arith.divf %242, %243 : vector<2x128xf32>
    %245 = arith.select %5, %239, %244 : vector<2x128xi1>, vector<2x128xf32>
    %246 = vector.extract_strided_slice %245 {offsets = [0, 0], sizes = [2, 32], strides = [1, 1]} : vector<2x128xf32> to vector<2x32xf32>
    %247 = vector.extract_strided_slice %245 {offsets = [0, 32], sizes = [2, 32], strides = [1, 1]} : vector<2x128xf32> to vector<2x32xf32>
    %248 = vector.extract_strided_slice %245 {offsets = [0, 64], sizes = [2, 32], strides = [1, 1]} : vector<2x128xf32> to vector<2x32xf32>
    %249 = vector.extract_strided_slice %245 {offsets = [0, 96], sizes = [2, 32], strides = [1, 1]} : vector<2x128xf32> to vector<2x32xf32>
    %250 = arith.mulf %247, %231 : vector<2x32xf32>
    %251 = arith.mulf %246, %248 : vector<2x32xf32>
    %252 = arith.addf %250, %251 : vector<2x32xf32>
    %253 = math.tanh %252 : vector<2x32xf32>
    %254 = arith.mulf %249, %253 : vector<2x32xf32>
    %c2_i32_74 = arith.constant 2 : i32
    %c2_i32_75 = arith.constant 2 : i32
    %255 = arith.muli %c2_i32_74, %c2_i32_75 : i32
    %256 = arith.index_cast %255 : i32 to index
    %c0_76 = arith.constant 0 : index
    %257 = vector.load %arg8[%256, %c0_76] : memref<16x128xf32, #tpu.memory_space<vmem>>, vector<2x128xf32>
    %cst_77 = arith.constant dense<0.000000e+00> : vector<2x128xf32>
    %258 = tpu.matmul %254, %211, %cst_77 {dimension_numbers = #tpu.dot_dimension_numbers<[1], [0], [0], [1], [0, 0, 1, 1], [], []>} : vector<2x32xf32>, vector<32x128xf32>, vector<2x128xf32> -> vector<2x128xf32>
    %259 = arith.addf %257, %258 : vector<2x128xf32>
    %260 = math.tanh %259 : vector<2x128xf32>
    %261 = arith.negf %259 : vector<2x128xf32>
    %262 = math.exp %261 : vector<2x128xf32>
    %cst_78 = arith.constant 1.000000e+00 : f32
    %263 = vector.broadcast %cst_78 : f32 to vector<2x128xf32>
    %264 = arith.addf %263, %262 : vector<2x128xf32>
    %265 = arith.divf %263, %264 : vector<2x128xf32>
    %266 = arith.select %5, %260, %265 : vector<2x128xi1>, vector<2x128xf32>
    %267 = vector.extract_strided_slice %266 {offsets = [0, 0], sizes = [2, 32], strides = [1, 1]} : vector<2x128xf32> to vector<2x32xf32>
    %268 = vector.extract_strided_slice %266 {offsets = [0, 32], sizes = [2, 32], strides = [1, 1]} : vector<2x128xf32> to vector<2x32xf32>
    %269 = vector.extract_strided_slice %266 {offsets = [0, 64], sizes = [2, 32], strides = [1, 1]} : vector<2x128xf32> to vector<2x32xf32>
    %270 = vector.extract_strided_slice %266 {offsets = [0, 96], sizes = [2, 32], strides = [1, 1]} : vector<2x128xf32> to vector<2x32xf32>
    %271 = arith.mulf %268, %252 : vector<2x32xf32>
    %272 = arith.mulf %267, %269 : vector<2x32xf32>
    %273 = arith.addf %271, %272 : vector<2x32xf32>
    %274 = math.tanh %273 : vector<2x32xf32>
    %275 = arith.mulf %270, %274 : vector<2x32xf32>
    %c3_i32_79 = arith.constant 3 : i32
    %c2_i32_80 = arith.constant 2 : i32
    %276 = arith.muli %c3_i32_79, %c2_i32_80 : i32
    %277 = arith.index_cast %276 : i32 to index
    %c0_81 = arith.constant 0 : index
    %278 = vector.load %arg8[%277, %c0_81] : memref<16x128xf32, #tpu.memory_space<vmem>>, vector<2x128xf32>
    %cst_82 = arith.constant dense<0.000000e+00> : vector<2x128xf32>
    %279 = tpu.matmul %275, %211, %cst_82 {dimension_numbers = #tpu.dot_dimension_numbers<[1], [0], [0], [1], [0, 0, 1, 1], [], []>} : vector<2x32xf32>, vector<32x128xf32>, vector<2x128xf32> -> vector<2x128xf32>
    %280 = arith.addf %278, %279 : vector<2x128xf32>
    %281 = math.tanh %280 : vector<2x128xf32>
    %282 = arith.negf %280 : vector<2x128xf32>
    %283 = math.exp %282 : vector<2x128xf32>
    %cst_83 = arith.constant 1.000000e+00 : f32
    %284 = vector.broadcast %cst_83 : f32 to vector<2x128xf32>
    %285 = arith.addf %284, %283 : vector<2x128xf32>
    %286 = arith.divf %284, %285 : vector<2x128xf32>
    %287 = arith.select %5, %281, %286 : vector<2x128xi1>, vector<2x128xf32>
    %288 = vector.extract_strided_slice %287 {offsets = [0, 0], sizes = [2, 32], strides = [1, 1]} : vector<2x128xf32> to vector<2x32xf32>
    %289 = vector.extract_strided_slice %287 {offsets = [0, 32], sizes = [2, 32], strides = [1, 1]} : vector<2x128xf32> to vector<2x32xf32>
    %290 = vector.extract_strided_slice %287 {offsets = [0, 64], sizes = [2, 32], strides = [1, 1]} : vector<2x128xf32> to vector<2x32xf32>
    %291 = vector.extract_strided_slice %287 {offsets = [0, 96], sizes = [2, 32], strides = [1, 1]} : vector<2x128xf32> to vector<2x32xf32>
    %292 = arith.mulf %289, %273 : vector<2x32xf32>
    %293 = arith.mulf %288, %290 : vector<2x32xf32>
    %294 = arith.addf %292, %293 : vector<2x32xf32>
    %295 = math.tanh %294 : vector<2x32xf32>
    %296 = arith.mulf %291, %295 : vector<2x32xf32>
    %c4_i32_84 = arith.constant 4 : i32
    %c2_i32_85 = arith.constant 2 : i32
    %297 = arith.muli %c4_i32_84, %c2_i32_85 : i32
    %298 = arith.index_cast %297 : i32 to index
    %c0_86 = arith.constant 0 : index
    %299 = vector.load %arg8[%298, %c0_86] : memref<16x128xf32, #tpu.memory_space<vmem>>, vector<2x128xf32>
    %cst_87 = arith.constant dense<0.000000e+00> : vector<2x128xf32>
    %300 = tpu.matmul %296, %211, %cst_87 {dimension_numbers = #tpu.dot_dimension_numbers<[1], [0], [0], [1], [0, 0, 1, 1], [], []>} : vector<2x32xf32>, vector<32x128xf32>, vector<2x128xf32> -> vector<2x128xf32>
    %301 = arith.addf %299, %300 : vector<2x128xf32>
    %302 = math.tanh %301 : vector<2x128xf32>
    %303 = arith.negf %301 : vector<2x128xf32>
    %304 = math.exp %303 : vector<2x128xf32>
    %cst_88 = arith.constant 1.000000e+00 : f32
    %305 = vector.broadcast %cst_88 : f32 to vector<2x128xf32>
    %306 = arith.addf %305, %304 : vector<2x128xf32>
    %307 = arith.divf %305, %306 : vector<2x128xf32>
    %308 = arith.select %5, %302, %307 : vector<2x128xi1>, vector<2x128xf32>
    %309 = vector.extract_strided_slice %308 {offsets = [0, 0], sizes = [2, 32], strides = [1, 1]} : vector<2x128xf32> to vector<2x32xf32>
    %310 = vector.extract_strided_slice %308 {offsets = [0, 32], sizes = [2, 32], strides = [1, 1]} : vector<2x128xf32> to vector<2x32xf32>
    %311 = vector.extract_strided_slice %308 {offsets = [0, 64], sizes = [2, 32], strides = [1, 1]} : vector<2x128xf32> to vector<2x32xf32>
    %312 = vector.extract_strided_slice %308 {offsets = [0, 96], sizes = [2, 32], strides = [1, 1]} : vector<2x128xf32> to vector<2x32xf32>
    %313 = arith.mulf %310, %294 : vector<2x32xf32>
    %314 = arith.mulf %309, %311 : vector<2x32xf32>
    %315 = arith.addf %313, %314 : vector<2x32xf32>
    %316 = math.tanh %315 : vector<2x32xf32>
    %317 = arith.mulf %312, %316 : vector<2x32xf32>
    %c5_i32_89 = arith.constant 5 : i32
    %c2_i32_90 = arith.constant 2 : i32
    %318 = arith.muli %c5_i32_89, %c2_i32_90 : i32
    %319 = arith.index_cast %318 : i32 to index
    %c0_91 = arith.constant 0 : index
    %320 = vector.load %arg8[%319, %c0_91] : memref<16x128xf32, #tpu.memory_space<vmem>>, vector<2x128xf32>
    %cst_92 = arith.constant dense<0.000000e+00> : vector<2x128xf32>
    %321 = tpu.matmul %317, %211, %cst_92 {dimension_numbers = #tpu.dot_dimension_numbers<[1], [0], [0], [1], [0, 0, 1, 1], [], []>} : vector<2x32xf32>, vector<32x128xf32>, vector<2x128xf32> -> vector<2x128xf32>
    %322 = arith.addf %320, %321 : vector<2x128xf32>
    %323 = math.tanh %322 : vector<2x128xf32>
    %324 = arith.negf %322 : vector<2x128xf32>
    %325 = math.exp %324 : vector<2x128xf32>
    %cst_93 = arith.constant 1.000000e+00 : f32
    %326 = vector.broadcast %cst_93 : f32 to vector<2x128xf32>
    %327 = arith.addf %326, %325 : vector<2x128xf32>
    %328 = arith.divf %326, %327 : vector<2x128xf32>
    %329 = arith.select %5, %323, %328 : vector<2x128xi1>, vector<2x128xf32>
    %330 = vector.extract_strided_slice %329 {offsets = [0, 0], sizes = [2, 32], strides = [1, 1]} : vector<2x128xf32> to vector<2x32xf32>
    %331 = vector.extract_strided_slice %329 {offsets = [0, 32], sizes = [2, 32], strides = [1, 1]} : vector<2x128xf32> to vector<2x32xf32>
    %332 = vector.extract_strided_slice %329 {offsets = [0, 64], sizes = [2, 32], strides = [1, 1]} : vector<2x128xf32> to vector<2x32xf32>
    %333 = vector.extract_strided_slice %329 {offsets = [0, 96], sizes = [2, 32], strides = [1, 1]} : vector<2x128xf32> to vector<2x32xf32>
    %334 = arith.mulf %331, %315 : vector<2x32xf32>
    %335 = arith.mulf %330, %332 : vector<2x32xf32>
    %336 = arith.addf %334, %335 : vector<2x32xf32>
    %337 = math.tanh %336 : vector<2x32xf32>
    %338 = arith.mulf %333, %337 : vector<2x32xf32>
    %c6_i32_94 = arith.constant 6 : i32
    %c2_i32_95 = arith.constant 2 : i32
    %339 = arith.muli %c6_i32_94, %c2_i32_95 : i32
    %340 = arith.index_cast %339 : i32 to index
    %c0_96 = arith.constant 0 : index
    %341 = vector.load %arg8[%340, %c0_96] : memref<16x128xf32, #tpu.memory_space<vmem>>, vector<2x128xf32>
    %cst_97 = arith.constant dense<0.000000e+00> : vector<2x128xf32>
    %342 = tpu.matmul %338, %211, %cst_97 {dimension_numbers = #tpu.dot_dimension_numbers<[1], [0], [0], [1], [0, 0, 1, 1], [], []>} : vector<2x32xf32>, vector<32x128xf32>, vector<2x128xf32> -> vector<2x128xf32>
    %343 = arith.addf %341, %342 : vector<2x128xf32>
    %344 = math.tanh %343 : vector<2x128xf32>
    %345 = arith.negf %343 : vector<2x128xf32>
    %346 = math.exp %345 : vector<2x128xf32>
    %cst_98 = arith.constant 1.000000e+00 : f32
    %347 = vector.broadcast %cst_98 : f32 to vector<2x128xf32>
    %348 = arith.addf %347, %346 : vector<2x128xf32>
    %349 = arith.divf %347, %348 : vector<2x128xf32>
    %350 = arith.select %5, %344, %349 : vector<2x128xi1>, vector<2x128xf32>
    %351 = vector.extract_strided_slice %350 {offsets = [0, 0], sizes = [2, 32], strides = [1, 1]} : vector<2x128xf32> to vector<2x32xf32>
    %352 = vector.extract_strided_slice %350 {offsets = [0, 32], sizes = [2, 32], strides = [1, 1]} : vector<2x128xf32> to vector<2x32xf32>
    %353 = vector.extract_strided_slice %350 {offsets = [0, 64], sizes = [2, 32], strides = [1, 1]} : vector<2x128xf32> to vector<2x32xf32>
    %354 = vector.extract_strided_slice %350 {offsets = [0, 96], sizes = [2, 32], strides = [1, 1]} : vector<2x128xf32> to vector<2x32xf32>
    %355 = arith.mulf %352, %336 : vector<2x32xf32>
    %356 = arith.mulf %351, %353 : vector<2x32xf32>
    %357 = arith.addf %355, %356 : vector<2x32xf32>
    %358 = math.tanh %357 : vector<2x32xf32>
    %359 = arith.mulf %354, %358 : vector<2x32xf32>
    %c7_i32_99 = arith.constant 7 : i32
    %c2_i32_100 = arith.constant 2 : i32
    %360 = arith.muli %c7_i32_99, %c2_i32_100 : i32
    %361 = arith.index_cast %360 : i32 to index
    %c0_101 = arith.constant 0 : index
    %362 = vector.load %arg8[%361, %c0_101] : memref<16x128xf32, #tpu.memory_space<vmem>>, vector<2x128xf32>
    %cst_102 = arith.constant dense<0.000000e+00> : vector<2x128xf32>
    %363 = tpu.matmul %359, %211, %cst_102 {dimension_numbers = #tpu.dot_dimension_numbers<[1], [0], [0], [1], [0, 0, 1, 1], [], []>} : vector<2x32xf32>, vector<32x128xf32>, vector<2x128xf32> -> vector<2x128xf32>
    %364 = arith.addf %362, %363 : vector<2x128xf32>
    %365 = math.tanh %364 : vector<2x128xf32>
    %366 = arith.negf %364 : vector<2x128xf32>
    %367 = math.exp %366 : vector<2x128xf32>
    %cst_103 = arith.constant 1.000000e+00 : f32
    %368 = vector.broadcast %cst_103 : f32 to vector<2x128xf32>
    %369 = arith.addf %368, %367 : vector<2x128xf32>
    %370 = arith.divf %368, %369 : vector<2x128xf32>
    %371 = arith.select %5, %365, %370 : vector<2x128xi1>, vector<2x128xf32>
    %372 = vector.extract_strided_slice %371 {offsets = [0, 0], sizes = [2, 32], strides = [1, 1]} : vector<2x128xf32> to vector<2x32xf32>
    %373 = vector.extract_strided_slice %371 {offsets = [0, 32], sizes = [2, 32], strides = [1, 1]} : vector<2x128xf32> to vector<2x32xf32>
    %374 = vector.extract_strided_slice %371 {offsets = [0, 64], sizes = [2, 32], strides = [1, 1]} : vector<2x128xf32> to vector<2x32xf32>
    %375 = vector.extract_strided_slice %371 {offsets = [0, 96], sizes = [2, 32], strides = [1, 1]} : vector<2x128xf32> to vector<2x32xf32>
    %376 = arith.mulf %373, %357 : vector<2x32xf32>
    %377 = arith.mulf %372, %374 : vector<2x32xf32>
    %378 = arith.addf %376, %377 : vector<2x32xf32>
    %379 = math.tanh %378 : vector<2x32xf32>
    %380 = arith.mulf %375, %379 : vector<2x32xf32>
    %c8_i32_104 = arith.constant 8 : i32
    %c0_105 = arith.constant 0 : index
    %c0_106 = arith.constant 0 : index
    %381 = vector.load %arg4[%c0_105, %c0_106] : memref<32x1xf32, #tpu.memory_space<vmem>>, vector<32x1xf32>
    %cst_107 = arith.constant dense<0.000000e+00> : vector<2x1xf32>
    %382 = tpu.matmul %380, %381, %cst_107 {dimension_numbers = #tpu.dot_dimension_numbers<[1], [0], [0], [1], [0, 0, 1, 1], [], []>} : vector<2x32xf32>, vector<32x1xf32>, vector<2x1xf32> -> vector<2x1xf32>
    %c0_108 = arith.constant 0 : index
    %c0_109 = arith.constant 0 : index
    %383 = vector.load %arg5[%c0_108, %c0_109] : memref<1x1xf32, #tpu.memory_space<vmem>>, vector<1x1xf32>
    %384 = vector.broadcast %383 : vector<1x1xf32> to vector<2x1xf32>
    %385 = arith.addf %382, %384 : vector<2x1xf32>
    %c0_110 = arith.constant 0 : index
    %c0_111 = arith.constant 0 : index
    %386 = vector.load %arg6[%c0_110, %c0_111] : memref<2x1xf32, #tpu.memory_space<vmem>>, vector<2x1xf32>
    tpu.vector_store %arg6[%c0_110, %c0_111], %385 {strides = array<i32>} : memref<2x1xf32, #tpu.memory_space<vmem>>, vector<2x1xf32>,
    return
  }
}

</mosaic_0001>

<llo_original>
// kernel: cpg_predictor_forward.1
$region0: #{cpg_predictor_forward.1}
  #allocation0 [shape = 'u32[]', space=smem, size = 0x4, offset = 0x4, fixed_abs, tag = 'smem constant byte address 0x4 - core index']
  #allocation1 [shape = 'u32[144,128]{1,0:T(1,128)}', space=vmem, size = 0x12000, scoped, tag = 'internal scratch']
  #allocation2 [shape = 'f32[16,32]{1,0:T(8,128)}', space=vmem, size = 0x2000, scoped, tag = 'scratch operand']
  #allocation3 [shape = 'f32[16,128]{1,0:T(8,128)}', space=vmem, size = 0x2000, scoped, tag = 'scratch operand']
  #allocation4 [shape = 'f32[1,1]{1,0:T(1,128)S(1)}', space=vmem, size = 0x200, scoped, tag = 'scoped memory for cpg_predictor_forward.1']
  %s0 = inlined_call_operand.vmem [shape: f32[16,128], index: 0, kind: input, shape index: {}]
  %s1 = inlined_call_operand.vmem [shape: f32[1,32,128], index: 1, kind: input, shape index: {}]
  %s2 = inlined_call_operand.vmem [shape: f32[2,32,128], index: 2, kind: input, shape index: {}]
  %s3 = inlined_call_operand.vmem [shape: f32[1,1,128], index: 3, kind: input, shape index: {}]
  %s4 = inlined_call_operand.vmem [shape: f32[32,1], index: 4, kind: input, shape index: {}]
  %s5 = inlined_call_operand.<no memory space> [shape: f32[1,1], index: 5, kind: input, shape index: {}]
  %s6 = inlined_call_operand.vmem [shape: f32[2,1], index: 6, kind: output, shape index: {}]
  %s7 = sld [smem:[#allocation0]]
  $region34: #{cpg_predictor_forward.1} parent=0
    _
  %s9 = ssub.s32 1, %s7
  %s10 = scalar_select 0, %s9, %s7
  %v11 = vstv %s5
  %12 = vst [vmem:[#allocation4] sm:$0x1] %v11
  // Predicated region
  $region2: #{cpg_predictor_forward.1} parent=0 // pred_check
    _
  $region3: #{cpg_predictor_forward.1} parent=0 // pred_check_branch
    %14 = sbr.rel (0) target = $region5
  $region4: #{cpg_predictor_forward.1} parent=0 // pred_region
    _
  $region5: #{cpg_predictor_forward.1} parent=0 // pred_fallthru
    _
  // Predicated region
  $region6: #{cpg_predictor_forward.1} parent=0 // pred_check
    _
  $region7: #{cpg_predictor_forward.1} parent=0 // pred_check_branch
    %16 = sbr.rel (0) target = $region9
  $region8: #{cpg_predictor_forward.1} parent=0 // pred_region
    _
  $region9: #{cpg_predictor_forward.1} parent=0 // pred_fallthru
    _
  // Predicated region
  $region10: #{cpg_predictor_forward.1} parent=0 // pred_check
    _
  $region11: #{cpg_predictor_forward.1} parent=0 // pred_check_branch
    %18 = sbr.rel (0) target = $region13
  $region12: #{cpg_predictor_forward.1} parent=0 // pred_region
    _
  $region13: #{cpg_predictor_forward.1} parent=0 // pred_fallthru
    _
  // Predicated region
  $region14: #{cpg_predictor_forward.1} parent=0 // pred_check
    _
  $region15: #{cpg_predictor_forward.1} parent=0 // pred_check_branch
    %20 = sbr.rel (0) target = $region17
  $region16: #{cpg_predictor_forward.1} parent=0 // pred_region
    _
  $region17: #{cpg_predictor_forward.1} parent=0 // pred_fallthru
    _
  // Predicated region
  $region18: #{cpg_predictor_forward.1} parent=0 // pred_check
    _
  $region19: #{cpg_predictor_forward.1} parent=0 // pred_check_branch
    %22 = sbr.rel (0) target = $region21
  $region20: #{cpg_predictor_forward.1} parent=0 // pred_region
    _
  $region21: #{cpg_predictor_forward.1} parent=0 // pred_fallthru
    _
  // Predicated region
  $region22: #{cpg_predictor_forward.1} parent=0 // pred_check
    _
  $region23: #{cpg_predictor_forward.1} parent=0 // pred_check_branch
    %24 = sbr.rel (0) target = $region25
  $region24: #{cpg_predictor_forward.1} parent=0 // pred_region
    _
  $region25: #{cpg_predictor_forward.1} parent=0 // pred_fallthru
    _
  %v25 = vlaneseq
  %v26 = vand.u32 %v25, 127
  %vm27 = vcmp.ge.s32.totalorder %v26, 64
  %vm28 = vcmp.lt.s32.totalorder %v26, 96
  %vm29 = vmand %vm27, %vm28
  %v30 = vld [vmem:[%s2] sm:$0xff]
  %v31 = vld [vmem:[%s2 + $0x8] sm:$0xff]
  %v32 = vld [vmem:[%s2 + $0x10] sm:$0xff]
  %v33 = vld [vmem:[%s2 + $0x18] sm:$0xff]
  %v34 = vld [vmem:[%s0] sm:$0x3]
  %vm35 = vcmask 261120
  %v37 = vsel %vm35, 0.0, 0
  %39 = vmatprep.subr.mxu0 0.0
  %40 = vmatpush1.msra.mxu0 0.0
  %41 = vmatprep.subr.mxu0 0.0
  %42 = vmatpush1.msra.mxu0 0.0
  %43 = vmatprep.subr.mxu0 0.0
  %44 = vmatpush1.msra.mxu0 0.0
  %45 = vmatprep.subr.mxu0 0.0
  %46 = vmatpush1.msra.mxu0 0.0
  %47 = vmatprep.subr.mxu0 0.0
  %48 = vmatpush1.msra.mxu0 0.0
  %49 = vmatprep.subr.mxu0 0.0
  %50 = vmatpush1.msra.mxu0 0.0
  %51 = vmatprep.subr.mxu0 0.0
  %52 = vmatpush1.msra.mxu0 0.0
  %53 = vmatprep.subr.mxu0 0.0
  %54 = vmatpush1.msra.mxu0 0.0
  %55 = vmatprep.subr.mxu0 0.0
  %56 = vmatpush1.msra.mxu0 0.0
  %57 = vmatprep.subr.mxu0 0.0
  %58 = vmatpush1.msra.mxu0 0.0
  %59 = vmatprep.subr.mxu0 0.0
  %60 = vmatpush1.msra.mxu0 0.0
  %61 = vmatprep.subr.mxu0 0.0
  %62 = vmatpush1.msra.mxu0 0.0
  %63 = vmatprep.subr.mxu0 0.0
  %64 = vmatpush1.msra.mxu0 %v33
  %65 = vmatprep.subr.mxu0 0.0
  %66 = vmatpush1.msra.mxu0 %v32
  %67 = vmatprep.subr.mxu0 0.0
  %68 = vmatpush1.msra.mxu0 %v31
  %69 = vmatprep.subr.mxu0 0.0
  %70 = vmatpush1.msra.mxu0 %v30
  %71 = vmatprep.subr.mxu0 0.0
  %72 = vmatpush2.msra.mxu0 0.0
  %73 = vmatprep.subr.mxu0 0.0
  %74 = vmatpush2.msra.mxu0 0.0
  %75 = vmatprep.subr.mxu0 0.0
  %76 = vmatpush2.msra.mxu0 0.0
  %77 = vmatprep.subr.mxu0 0.0
  %78 = vmatpush2.msra.mxu0 0.0
  %79 = vmatprep.subr.mxu0 0.0
  %80 = vmatpush2.msra.mxu0 0.0
  %81 = vmatprep.subr.mxu0 0.0
  %82 = vmatpush2.msra.mxu0 0.0
  %83 = vmatprep.subr.mxu0 0.0
  %84 = vmatpush2.msra.mxu0 0.0
  %85 = vmatprep.subr.mxu0 0.0
  %86 = vmatpush2.msra.mxu0 0.0
  %87 = vmatprep.subr.mxu0 0.0
  %88 = vmatpush2.msra.mxu0 0.0
  %89 = vmatprep.subr.mxu0 0.0
  %90 = vmatpush2.msra.mxu0 0.0
  %91 = vmatprep.subr.mxu0 0.0
  %92 = vmatpush2.msra.mxu0 0.0
  %93 = vmatprep.subr.mxu0 0.0
  %94 = vmatpush2.msra.mxu0 0.0
  %95 = vmatprep.subr.mxu0 0.0
  %96 = vmatpush2.msra.mxu0 0.0
  %97 = vmatprep.subr.mxu0 0.0
  %98 = vmatpush2.msra.mxu0 0.0
  %99 = vmatprep.subr.mxu0 0.0
  %100 = vmatpush2.msra.mxu0 0.0
  %101 = vmatprep.subr.mxu0 0.0
  %102 = vmatpush2.msra.mxu0 0.0
  %103 = vmatprep.mubr.f32.mxu0 0.0
  %104 = vmatmul.mubr.f32.gmra.mxu0 %v37
  %v105 = vpop.f32.mrf.mxu0
  %v106 = vadd.f32 0.0, %v105
  %v107 = vpop.f32.mrf.mxu0
  %108 = vdwg.mxu0
  %v109 = vadd.f32 %v34, %v106
  %v110 = vtanh.pop %v109
  %v111 = vxor.u32 %v109, 2147483648
  %v112 = vmul.f32 %v111, 1.442695
  %v113 = vpow.pop %v112
  %v114 = vadd.f32 %v113, 1.0
  %v115 = vrcp.pop %v114
  %v116 = vmul.f32 1.0, %v115
  %v117 = vsel %vm29, %v110, %v116
  %v118 = vmul.f32 %v117, 0.0
  %120 = vrot.lane.b32.xlu0 %v117, 64
  %v121 = vpop.permute.xlu0 %120
  %v123 = vmul.f32 %v117, %v121
  %125 = vrot.lane.b32.xlu0 %v123, 32
  %v126 = vpop.permute.xlu0 %125
  %v128 = vadd.f32 %v118, %v126
  %v129 = vtanh.pop %v128
  %131 = vrot.lane.b32.xlu0 %v129, 64
  %v132 = vpop.permute.xlu0 %131
  %v134 = vmul.f32 %v117, %v132
  %136 = vrot.lane.b32.xlu0 %v134, 32
  %v137 = vpop.permute.xlu0 %136
  %vm139 = vcmask 254976
  %140 = vst.msk [vmem:[#allocation2] sm:$0x3] %vm139, %v137
  %v141 = vld [vmem:[%s0 + $0x2] sm:$0x3]
  %v142 = vsel %vm35, %v137, 0
  %144 = vmatprep.subr.mxu0 0.0
  %145 = vmatpush1.msra.mxu0 0.0
  %146 = vmatprep.subr.mxu0 0.0
  %147 = vmatpush1.msra.mxu0 0.0
  %148 = vmatprep.subr.mxu0 0.0
  %149 = vmatpush1.msra.mxu0 0.0
  %150 = vmatprep.subr.mxu0 0.0
  %151 = vmatpush1.msra.mxu0 0.0
  %152 = vmatprep.subr.mxu0 0.0
  %153 = vmatpush1.msra.mxu0 0.0
  %154 = vmatprep.subr.mxu0 0.0
  %155 = vmatpush1.msra.mxu0 0.0
  %156 = vmatprep.subr.mxu0 0.0
  %157 = vmatpush1.msra.mxu0 0.0
  %158 = vmatprep.subr.mxu0 0.0
  %159 = vmatpush1.msra.mxu0 0.0
  %160 = vmatprep.subr.mxu0 0.0
  %161 = vmatpush1.msra.mxu0 0.0
  %162 = vmatprep.subr.mxu0 0.0
  %163 = vmatpush1.msra.mxu0 0.0
  %164 = vmatprep.subr.mxu0 0.0
  %165 = vmatpush1.msra.mxu0 0.0
  %166 = vmatprep.subr.mxu0 0.0
  %167 = vmatpush1.msra.mxu0 0.0
  %168 = vmatprep.subr.mxu0 0.0
  %169 = vmatpush1.msra.mxu0 %v33
  %170 = vmatprep.subr.mxu0 0.0
  %171 = vmatpush1.msra.mxu0 %v32
  %172 = vmatprep.subr.mxu0 0.0
  %173 = vmatpush1.msra.mxu0 %v31
  %174 = vmatprep.subr.mxu0 0.0
  %175 = vmatpush1.msra.mxu0 %v30
  %176 = vmatprep.subr.mxu0 0.0
  %177 = vmatpush2.msra.mxu0 0.0
  %178 = vmatprep.subr.mxu0 0.0
  %179 = vmatpush2.msra.mxu0 0.0
  %180 = vmatprep.subr.mxu0 0.0
  %181 = vmatpush2.msra.mxu0 0.0
  %182 = vmatprep.subr.mxu0 0.0
  %183 = vmatpush2.msra.mxu0 0.0
  %184 = vmatprep.subr.mxu0 0.0
  %185 = vmatpush2.msra.mxu0 0.0
  %186 = vmatprep.subr.mxu0 0.0
  %187 = vmatpush2.msra.mxu0 0.0
  %188 = vmatprep.subr.mxu0 0.0
  %189 = vmatpush2.msra.mxu0 0.0
  %190 = vmatprep.subr.mxu0 0.0
  %191 = vmatpush2.msra.mxu0 0.0
  %192 = vmatprep.subr.mxu0 0.0
  %193 = vmatpush2.msra.mxu0 0.0
  %194 = vmatprep.subr.mxu0 0.0
  %195 = vmatpush2.msra.mxu0 0.0
  %196 = vmatprep.subr.mxu0 0.0
  %197 = vmatpush2.msra.mxu0 0.0
  %198 = vmatprep.subr.mxu0 0.0
  %199 = vmatpush2.msra.mxu0 0.0
  %200 = vmatprep.subr.mxu0 0.0
  %201 = vmatpush2.msra.mxu0 0.0
  %202 = vmatprep.subr.mxu0 0.0
  %203 = vmatpush2.msra.mxu0 0.0
  %204 = vmatprep.subr.mxu0 0.0
  %205 = vmatpush2.msra.mxu0 0.0
  %206 = vmatprep.subr.mxu0 0.0
  %207 = vmatpush2.msra.mxu0 0.0
  %208 = vmatprep.mubr.f32.mxu0 0.0
  %209 = vmatmul.mubr.f32.gmra.mxu0 %v142
  %v210 = vpop.f32.mrf.mxu0
  %v211 = vadd.f32 0.0, %v210
  %v212 = vpop.f32.mrf.mxu0
  %213 = vdwg.mxu0
  %v214 = vadd.f32 %v141, %v211
  %v215 = vtanh.pop %v214
  %v216 = vxor.u32 %v214, 2147483648
  %v217 = vmul.f32 %v216, 1.442695
  %v218 = vpow.pop %v217
  %v219 = vadd.f32 %v218, 1.0
  %v220 = vrcp.pop %v219
  %v221 = vmul.f32 1.0, %v220
  %v222 = vsel %vm29, %v215, %v221
  %v223 = vmul.f32 %v222, %v128
  %225 = vrot.lane.b32.xlu0 %v222, 64
  %v226 = vpop.permute.xlu0 %225
  %v228 = vmul.f32 %v222, %v226
  %230 = vrot.lane.b32.xlu0 %v228, 32
  %v231 = vpop.permute.xlu0 %230
  %v233 = vadd.f32 %v223, %v231
  %v234 = vtanh.pop %v233
  %236 = vrot.lane.b32.xlu0 %v234, 64
  %v237 = vpop.permute.xlu0 %236
  %v239 = vmul.f32 %v222, %v237
  %241 = vrot.lane.b32.xlu0 %v239, 32
  %v242 = vpop.permute.xlu0 %241
  %244 = vst.msk [vmem:[#allocation2 + $0x2] sm:$0x3] %vm139, %v242
  %v245 = vld [vmem:[%s0 + $0x4] sm:$0x3]
  %v246 = vsel %vm35, %v242, 0
  %248 = vmatprep.subr.mxu0 0.0
  %249 = vmatpush1.msra.mxu0 0.0
  %250 = vmatprep.subr.mxu0 0.0
  %251 = vmatpush1.msra.mxu0 0.0
  %252 = vmatprep.subr.mxu0 0.0
  %253 = vmatpush1.msra.mxu0 0.0
  %254 = vmatprep.subr.mxu0 0.0
  %255 = vmatpush1.msra.mxu0 0.0
  %256 = vmatprep.subr.mxu0 0.0
  %257 = vmatpush1.msra.mxu0 0.0
  %258 = vmatprep.subr.mxu0 0.0
  %259 = vmatpush1.msra.mxu0 0.0
  %260 = vmatprep.subr.mxu0 0.0
  %261 = vmatpush1.msra.mxu0 0.0
  %262 = vmatprep.subr.mxu0 0.0
  %263 = vmatpush1.msra.mxu0 0.0
  %264 = vmatprep.subr.mxu0 0.0
  %265 = vmatpush1.msra.mxu0 0.0
  %266 = vmatprep.subr.mxu0 0.0
  %267 = vmatpush1.msra.mxu0 0.0
  %268 = vmatprep.subr.mxu0 0.0
  %269 = vmatpush1.msra.mxu0 0.0
  %270 = vmatprep.subr.mxu0 0.0
  %271 = vmatpush1.msra.mxu0 0.0
  %272 = vmatprep.subr.mxu0 0.0
  %273 = vmatpush1.msra.mxu0 %v33
  %274 = vmatprep.subr.mxu0 0.0
  %275 = vmatpush1.msra.mxu0 %v32
  %276 = vmatprep.subr.mxu0 0.0
  %277 = vmatpush1.msra.mxu0 %v31
  %278 = vmatprep.subr.mxu0 0.0
  %279 = vmatpush1.msra.mxu0 %v30
  %280 = vmatprep.subr.mxu0 0.0
  %281 = vmatpush2.msra.mxu0 0.0
  %282 = vmatprep.subr.mxu0 0.0
  %283 = vmatpush2.msra.mxu0 0.0
  %284 = vmatprep.subr.mxu0 0.0
  %285 = vmatpush2.msra.mxu0 0.0
  %286 = vmatprep.subr.mxu0 0.0
  %287 = vmatpush2.msra.mxu0 0.0
  %288 = vmatprep.subr.mxu0 0.0
  %289 = vmatpush2.msra.mxu0 0.0
  %290 = vmatprep.subr.mxu0 0.0
  %291 = vmatpush2.msra.mxu0 0.0
  %292 = vmatprep.subr.mxu0 0.0
  %293 = vmatpush2.msra.mxu0 0.0
  %294 = vmatprep.subr.mxu0 0.0
  %295 = vmatpush2.msra.mxu0 0.0
  %296 = vmatprep.subr.mxu0 0.0
  %297 = vmatpush2.msra.mxu0 0.0
  %298 = vmatprep.subr.mxu0 0.0
  %299 = vmatpush2.msra.mxu0 0.0
  %300 = vmatprep.subr.mxu0 0.0
  %301 = vmatpush2.msra.mxu0 0.0
  %302 = vmatprep.subr.mxu0 0.0
  %303 = vmatpush2.msra.mxu0 0.0
  %304 = vmatprep.subr.mxu0 0.0
  %305 = vmatpush2.msra.mxu0 0.0
  %306 = vmatprep.subr.mxu0 0.0
  %307 = vmatpush2.msra.mxu0 0.0
  %308 = vmatprep.subr.mxu0 0.0
  %309 = vmatpush2.msra.mxu0 0.0
  %310 = vmatprep.subr.mxu0 0.0
  %311 = vmatpush2.msra.mxu0 0.0
  %312 = vmatprep.mubr.f32.mxu0 0.0
  %313 = vmatmul.mubr.f32.gmra.mxu0 %v246
  %v314 = vpop.f32.mrf.mxu0
  %v315 = vadd.f32 0.0, %v314
  %v316 = vpop.f32.mrf.mxu0
  %317 = vdwg.mxu0
  %v318 = vadd.f32 %v245, %v315
  %v319 = vtanh.pop %v318
  %v320 = vxor.u32 %v318, 2147483648
  %v321 = vmul.f32 %v320, 1.442695
  %v322 = vpow.pop %v321
  %v323 = vadd.f32 %v322, 1.0
  %v324 = vrcp.pop %v323
  %v325 = vmul.f32 1.0, %v324
  %v326 = vsel %vm29, %v319, %v325
  %v327 = vmul.f32 %v326, %v233
  %329 = vrot.lane.b32.xlu0 %v326, 64
  %v330 = vpop.permute.xlu0 %329
  %v332 = vmul.f32 %v326, %v330
  %334 = vrot.lane.b32.xlu0 %v332, 32
  %v335 = vpop.permute.xlu0 %334
  %v337 = vadd.f32 %v327, %v335
  %v338 = vtanh.pop %v337
  %340 = vrot.lane.b32.xlu0 %v338, 64
  %v341 = vpop.permute.xlu0 %340
  %v343 = vmul.f32 %v326, %v341
  %345 = vrot.lane.b32.xlu0 %v343, 32
  %v346 = vpop.permute.xlu0 %345
  %348 = vst.msk [vmem:[#allocation2 + $0x4] sm:$0x3] %vm139, %v346
  %v349 = vld [vmem:[%s0 + $0x6] sm:$0x3]
  %v350 = vsel %vm35, %v346, 0
  %352 = vmatprep.subr.mxu0 0.0
  %353 = vmatpush1.msra.mxu0 0.0
  %354 = vmatprep.subr.mxu0 0.0
  %355 = vmatpush1.msra.mxu0 0.0
  %356 = vmatprep.subr.mxu0 0.0
  %357 = vmatpush1.msra.mxu0 0.0
  %358 = vmatprep.subr.mxu0 0.0
  %359 = vmatpush1.msra.mxu0 0.0
  %360 = vmatprep.subr.mxu0 0.0
  %361 = vmatpush1.msra.mxu0 0.0
  %362 = vmatprep.subr.mxu0 0.0
  %363 = vmatpush1.msra.mxu0 0.0
  %364 = vmatprep.subr.mxu0 0.0
  %365 = vmatpush1.msra.mxu0 0.0
  %366 = vmatprep.subr.mxu0 0.0
  %367 = vmatpush1.msra.mxu0 0.0
  %368 = vmatprep.subr.mxu0 0.0
  %369 = vmatpush1.msra.mxu0 0.0
  %370 = vmatprep.subr.mxu0 0.0
  %371 = vmatpush1.msra.mxu0 0.0
  %372 = vmatprep.subr.mxu0 0.0
  %373 = vmatpush1.msra.mxu0 0.0
  %374 = vmatprep.subr.mxu0 0.0
  %375 = vmatpush1.msra.mxu0 0.0
  %376 = vmatprep.subr.mxu0 0.0
  %377 = vmatpush1.msra.mxu0 %v33
  %378 = vmatprep.subr.mxu0 0.0
  %379 = vmatpush1.msra.mxu0 %v32
  %380 = vmatprep.subr.mxu0 0.0
  %381 = vmatpush1.msra.mxu0 %v31
  %382 = vmatprep.subr.mxu0 0.0
  %383 = vmatpush1.msra.mxu0 %v30
  %384 = vmatprep.subr.mxu0 0.0
  %385 = vmatpush2.msra.mxu0 0.0
  %386 = vmatprep.subr.mxu0 0.0
  %387 = vmatpush2.msra.mxu0 0.0
  %388 = vmatprep.subr.mxu0 0.0
  %389 = vmatpush2.msra.mxu0 0.0
  %390 = vmatprep.subr.mxu0 0.0
  %391 = vmatpush2.msra.mxu0 0.0
  %392 = vmatprep.subr.mxu0 0.0
  %393 = vmatpush2.msra.mxu0 0.0
  %394 = vmatprep.subr.mxu0 0.0
  %395 = vmatpush2.msra.mxu0 0.0
  %396 = vmatprep.subr.mxu0 0.0
  %397 = vmatpush2.msra.mxu0 0.0
  %398 = vmatprep.subr.mxu0 0.0
  %399 = vmatpush2.msra.mxu0 0.0
  %400 = vmatprep.subr.mxu0 0.0
  %401 = vmatpush2.msra.mxu0 0.0
  %402 = vmatprep.subr.mxu0 0.0
  %403 = vmatpush2.msra.mxu0 0.0
  %404 = vmatprep.subr.mxu0 0.0
  %405 = vmatpush2.msra.mxu0 0.0
  %406 = vmatprep.subr.mxu0 0.0
  %407 = vmatpush2.msra.mxu0 0.0
  %408 = vmatprep.subr.mxu0 0.0
  %409 = vmatpush2.msra.mxu0 0.0
  %410 = vmatprep.subr.mxu0 0.0
  %411 = vmatpush2.msra.mxu0 0.0
  %412 = vmatprep.subr.mxu0 0.0
  %413 = vmatpush2.msra.mxu0 0.0
  %414 = vmatprep.subr.mxu0 0.0
  %415 = vmatpush2.msra.mxu0 0.0
  %416 = vmatprep.mubr.f32.mxu0 0.0
  %417 = vmatmul.mubr.f32.gmra.mxu0 %v350
  %v418 = vpop.f32.mrf.mxu0
  %v419 = vadd.f32 0.0, %v418
  %v420 = vpop.f32.mrf.mxu0
  %421 = vdwg.mxu0
  %v422 = vadd.f32 %v349, %v419
  %v423 = vtanh.pop %v422
  %v424 = vxor.u32 %v422, 2147483648
  %v425 = vmul.f32 %v424, 1.442695
  %v426 = vpow.pop %v425
  %v427 = vadd.f32 %v426, 1.0
  %v428 = vrcp.pop %v427
  %v429 = vmul.f32 1.0, %v428
  %v430 = vsel %vm29, %v423, %v429
  %v431 = vmul.f32 %v430, %v337
  %433 = vrot.lane.b32.xlu0 %v430, 64
  %v434 = vpop.permute.xlu0 %433
  %v436 = vmul.f32 %v430, %v434
  %438 = vrot.lane.b32.xlu0 %v436, 32
  %v439 = vpop.permute.xlu0 %438
  %v441 = vadd.f32 %v431, %v439
  %v442 = vtanh.pop %v441
  %444 = vrot.lane.b32.xlu0 %v442, 64
  %v445 = vpop.permute.xlu0 %444
  %v447 = vmul.f32 %v430, %v445
  %449 = vrot.lane.b32.xlu0 %v447, 32
  %v450 = vpop.permute.xlu0 %449
  %452 = vst.msk [vmem:[#allocation2 + $0x6] sm:$0x3] %vm139, %v450
  %v453 = vld [vmem:[%s0 + $0x8] sm:$0x3]
  %v454 = vsel %vm35, %v450, 0
  %456 = vmatprep.subr.mxu0 0.0
  %457 = vmatpush1.msra.mxu0 0.0
  %458 = vmatprep.subr.mxu0 0.0
  %459 = vmatpush1.msra.mxu0 0.0
  %460 = vmatprep.subr.mxu0 0.0
  %461 = vmatpush1.msra.mxu0 0.0
  %462 = vmatprep.subr.mxu0 0.0
  %463 = vmatpush1.msra.mxu0 0.0
  %464 = vmatprep.subr.mxu0 0.0
  %465 = vmatpush1.msra.mxu0 0.0
  %466 = vmatprep.subr.mxu0 0.0
  %467 = vmatpush1.msra.mxu0 0.0
  %468 = vmatprep.subr.mxu0 0.0
  %469 = vmatpush1.msra.mxu0 0.0
  %470 = vmatprep.subr.mxu0 0.0
  %471 = vmatpush1.msra.mxu0 0.0
  %472 = vmatprep.subr.mxu0 0.0
  %473 = vmatpush1.msra.mxu0 0.0
  %474 = vmatprep.subr.mxu0 0.0
  %475 = vmatpush1.msra.mxu0 0.0
  %476 = vmatprep.subr.mxu0 0.0
  %477 = vmatpush1.msra.mxu0 0.0
  %478 = vmatprep.subr.mxu0 0.0
  %479 = vmatpush1.msra.mxu0 0.0
  %480 = vmatprep.subr.mxu0 0.0
  %481 = vmatpush1.msra.mxu0 %v33
  %482 = vmatprep.subr.mxu0 0.0
  %483 = vmatpush1.msra.mxu0 %v32
  %484 = vmatprep.subr.mxu0 0.0
  %485 = vmatpush1.msra.mxu0 %v31
  %486 = vmatprep.subr.mxu0 0.0
  %487 = vmatpush1.msra.mxu0 %v30
  %488 = vmatprep.subr.mxu0 0.0
  %489 = vmatpush2.msra.mxu0 0.0
  %490 = vmatprep.subr.mxu0 0.0
  %491 = vmatpush2.msra.mxu0 0.0
  %492 = vmatprep.subr.mxu0 0.0
  %493 = vmatpush2.msra.mxu0 0.0
  %494 = vmatprep.subr.mxu0 0.0
  %495 = vmatpush2.msra.mxu0 0.0
  %496 = vmatprep.subr.mxu0 0.0
  %497 = vmatpush2.msra.mxu0 0.0
  %498 = vmatprep.subr.mxu0 0.0
  %499 = vmatpush2.msra.mxu0 0.0
  %500 = vmatprep.subr.mxu0 0.0
  %501 = vmatpush2.msra.mxu0 0.0
  %502 = vmatprep.subr.mxu0 0.0
  %503 = vmatpush2.msra.mxu0 0.0
  %504 = vmatprep.subr.mxu0 0.0
  %505 = vmatpush2.msra.mxu0 0.0
  %506 = vmatprep.subr.mxu0 0.0
  %507 = vmatpush2.msra.mxu0 0.0
  %508 = vmatprep.subr.mxu0 0.0
  %509 = vmatpush2.msra.mxu0 0.0
  %510 = vmatprep.subr.mxu0 0.0
  %511 = vmatpush2.msra.mxu0 0.0
  %512 = vmatprep.subr.mxu0 0.0
  %513 = vmatpush2.msra.mxu0 0.0
  %514 = vmatprep.subr.mxu0 0.0
  %515 = vmatpush2.msra.mxu0 0.0
  %516 = vmatprep.subr.mxu0 0.0
  %517 = vmatpush2.msra.mxu0 0.0
  %518 = vmatprep.subr.mxu0 0.0
  %519 = vmatpush2.msra.mxu0 0.0
  %520 = vmatprep.mubr.f32.mxu0 0.0
  %521 = vmatmul.mubr.f32.gmra.mxu0 %v454
  %v522 = vpop.f32.mrf.mxu0
  %v523 = vadd.f32 0.0, %v522
  %v524 = vpop.f32.mrf.mxu0
  %525 = vdwg.mxu0
  %v526 = vadd.f32 %v453, %v523
  %v527 = vtanh.pop %v526
  %v528 = vxor.u32 %v526, 2147483648
  %v529 = vmul.f32 %v528, 1.442695
  %v530 = vpow.pop %v529
  %v531 = vadd.f32 %v530, 1.0
  %v532 = vrcp.pop %v531
  %v533 = vmul.f32 1.0, %v532
  %v534 = vsel %vm29, %v527, %v533
  %v535 = vmul.f32 %v534, %v441
  %537 = vrot.lane.b32.xlu0 %v534, 64
  %v538 = vpop.permute.xlu0 %537
  %v540 = vmul.f32 %v534, %v538
  %542 = vrot.lane.b32.xlu0 %v540, 32
  %v543 = vpop.permute.xlu0 %542
  %v545 = vadd.f32 %v535, %v543
  %v546 = vtanh.pop %v545
  %548 = vrot.lane.b32.xlu0 %v546, 64
  %v549 = vpop.permute.xlu0 %548
  %v551 = vmul.f32 %v534, %v549
  %553 = vrot.lane.b32.xlu0 %v551, 32
  %v554 = vpop.permute.xlu0 %553
  %556 = vst.msk [vmem:[#allocation2 + $0x8] sm:$0x3] %vm139, %v554
  %v557 = vld [vmem:[%s0 + $0xa] sm:$0x3]
  %v558 = vsel %vm35, %v554, 0
  %560 = vmatprep.subr.mxu0 0.0
  %561 = vmatpush1.msra.mxu0 0.0
  %562 = vmatprep.subr.mxu0 0.0
  %563 = vmatpush1.msra.mxu0 0.0
  %564 = vmatprep.subr.mxu0 0.0
  %565 = vmatpush1.msra.mxu0 0.0
  %566 = vmatprep.subr.mxu0 0.0
  %567 = vmatpush1.msra.mxu0 0.0
  %568 = vmatprep.subr.mxu0 0.0
  %569 = vmatpush1.msra.mxu0 0.0
  %570 = vmatprep.subr.mxu0 0.0
  %571 = vmatpush1.msra.mxu0 0.0
  %572 = vmatprep.subr.mxu0 0.0
  %573 = vmatpush1.msra.mxu0 0.0
  %574 = vmatprep.subr.mxu0 0.0
  %575 = vmatpush1.msra.mxu0 0.0
  %576 = vmatprep.subr.mxu0 0.0
  %577 = vmatpush1.msra.mxu0 0.0
  %578 = vmatprep.subr.mxu0 0.0
  %579 = vmatpush1.msra.mxu0 0.0
  %580 = vmatprep.subr.mxu0 0.0
  %581 = vmatpush1.msra.mxu0 0.0
  %582 = vmatprep.subr.mxu0 0.0
  %583 = vmatpush1.msra.mxu0 0.0
  %584 = vmatprep.subr.mxu0 0.0
  %585 = vmatpush1.msra.mxu0 %v33
  %586 = vmatprep.subr.mxu0 0.0
  %587 = vmatpush1.msra.mxu0 %v32
  %588 = vmatprep.subr.mxu0 0.0
  %589 = vmatpush1.msra.mxu0 %v31
  %590 = vmatprep.subr.mxu0 0.0
  %591 = vmatpush1.msra.mxu0 %v30
  %592 = vmatprep.subr.mxu0 0.0
  %593 = vmatpush2.msra.mxu0 0.0
  %594 = vmatprep.subr.mxu0 0.0
  %595 = vmatpush2.msra.mxu0 0.0
  %596 = vmatprep.subr.mxu0 0.0
  %597 = vmatpush2.msra.mxu0 0.0
  %598 = vmatprep.subr.mxu0 0.0
  %599 = vmatpush2.msra.mxu0 0.0
  %600 = vmatprep.subr.mxu0 0.0
  %601 = vmatpush2.msra.mxu0 0.0
  %602 = vmatprep.subr.mxu0 0.0
  %603 = vmatpush2.msra.mxu0 0.0
  %604 = vmatprep.subr.mxu0 0.0
  %605 = vmatpush2.msra.mxu0 0.0
  %606 = vmatprep.subr.mxu0 0.0
  %607 = vmatpush2.msra.mxu0 0.0
  %608 = vmatprep.subr.mxu0 0.0
  %609 = vmatpush2.msra.mxu0 0.0
  %610 = vmatprep.subr.mxu0 0.0
  %611 = vmatpush2.msra.mxu0 0.0
  %612 = vmatprep.subr.mxu0 0.0
  %613 = vmatpush2.msra.mxu0 0.0
  %614 = vmatprep.subr.mxu0 0.0
  %615 = vmatpush2.msra.mxu0 0.0
  %616 = vmatprep.subr.mxu0 0.0
  %617 = vmatpush2.msra.mxu0 0.0
  %618 = vmatprep.subr.mxu0 0.0
  %619 = vmatpush2.msra.mxu0 0.0
  %620 = vmatprep.subr.mxu0 0.0
  %621 = vmatpush2.msra.mxu0 0.0
  %622 = vmatprep.subr.mxu0 0.0
  %623 = vmatpush2.msra.mxu0 0.0
  %624 = vmatprep.mubr.f32.mxu0 0.0
  %625 = vmatmul.mubr.f32.gmra.mxu0 %v558
  %v626 = vpop.f32.mrf.mxu0
  %v627 = vadd.f32 0.0, %v626
  %v628 = vpop.f32.mrf.mxu0
  %629 = vdwg.mxu0
  %v630 = vadd.f32 %v557, %v627
  %v631 = vtanh.pop %v630
  %v632 = vxor.u32 %v630, 2147483648
  %v633 = vmul.f32 %v632, 1.442695
  %v634 = vpow.pop %v633
  %v635 = vadd.f32 %v634, 1.0
  %v636 = vrcp.pop %v635
  %v637 = vmul.f32 1.0, %v636
  %v638 = vsel %vm29, %v631, %v637
  %v639 = vmul.f32 %v638, %v545
  %641 = vrot.lane.b32.xlu0 %v638, 64
  %v642 = vpop.permute.xlu0 %641
  %v644 = vmul.f32 %v638, %v642
  %646 = vrot.lane.b32.xlu0 %v644, 32
  %v647 = vpop.permute.xlu0 %646
  %v649 = vadd.f32 %v639, %v647
  %v650 = vtanh.pop %v649
  %652 = vrot.lane.b32.xlu0 %v650, 64
  %v653 = vpop.permute.xlu0 %652
  %v655 = vmul.f32 %v638, %v653
  %657 = vrot.lane.b32.xlu0 %v655, 32
  %v658 = vpop.permute.xlu0 %657
  %660 = vst.msk [vmem:[#allocation2 + $0xa] sm:$0x3] %vm139, %v658
  %v661 = vld [vmem:[%s0 + $0xc] sm:$0x3]
  %v662 = vsel %vm35, %v658, 0
  %664 = vmatprep.subr.mxu0 0.0
  %665 = vmatpush1.msra.mxu0 0.0
  %666 = vmatprep.subr.mxu0 0.0
  %667 = vmatpush1.msra.mxu0 0.0
  %668 = vmatprep.subr.mxu0 0.0
  %669 = vmatpush1.msra.mxu0 0.0
  %670 = vmatprep.subr.mxu0 0.0
  %671 = vmatpush1.msra.mxu0 0.0
  %672 = vmatprep.subr.mxu0 0.0
  %673 = vmatpush1.msra.mxu0 0.0
  %674 = vmatprep.subr.mxu0 0.0
  %675 = vmatpush1.msra.mxu0 0.0
  %676 = vmatprep.subr.mxu0 0.0
  %677 = vmatpush1.msra.mxu0 0.0
  %678 = vmatprep.subr.mxu0 0.0
  %679 = vmatpush1.msra.mxu0 0.0
  %680 = vmatprep.subr.mxu0 0.0
  %681 = vmatpush1.msra.mxu0 0.0
  %682 = vmatprep.subr.mxu0 0.0
  %683 = vmatpush1.msra.mxu0 0.0
  %684 = vmatprep.subr.mxu0 0.0
  %685 = vmatpush1.msra.mxu0 0.0
  %686 = vmatprep.subr.mxu0 0.0
  %687 = vmatpush1.msra.mxu0 0.0
  %688 = vmatprep.subr.mxu0 0.0
  %689 = vmatpush1.msra.mxu0 %v33
  %690 = vmatprep.subr.mxu0 0.0
  %691 = vmatpush1.msra.mxu0 %v32
  %692 = vmatprep.subr.mxu0 0.0
  %693 = vmatpush1.msra.mxu0 %v31
  %694 = vmatprep.subr.mxu0 0.0
  %695 = vmatpush1.msra.mxu0 %v30
  %696 = vmatprep.subr.mxu0 0.0
  %697 = vmatpush2.msra.mxu0 0.0
  %698 = vmatprep.subr.mxu0 0.0
  %699 = vmatpush2.msra.mxu0 0.0
  %700 = vmatprep.subr.mxu0 0.0
  %701 = vmatpush2.msra.mxu0 0.0
  %702 = vmatprep.subr.mxu0 0.0
  %703 = vmatpush2.msra.mxu0 0.0
  %704 = vmatprep.subr.mxu0 0.0
  %705 = vmatpush2.msra.mxu0 0.0
  %706 = vmatprep.subr.mxu0 0.0
  %707 = vmatpush2.msra.mxu0 0.0
  %708 = vmatprep.subr.mxu0 0.0
  %709 = vmatpush2.msra.mxu0 0.0
  %710 = vmatprep.subr.mxu0 0.0
  %711 = vmatpush2.msra.mxu0 0.0
  %712 = vmatprep.subr.mxu0 0.0
  %713 = vmatpush2.msra.mxu0 0.0
  %714 = vmatprep.subr.mxu0 0.0
  %715 = vmatpush2.msra.mxu0 0.0
  %716 = vmatprep.subr.mxu0 0.0
  %717 = vmatpush2.msra.mxu0 0.0
  %718 = vmatprep.subr.mxu0 0.0
  %719 = vmatpush2.msra.mxu0 0.0
  %720 = vmatprep.subr.mxu0 0.0
  %721 = vmatpush2.msra.mxu0 0.0
  %722 = vmatprep.subr.mxu0 0.0
  %723 = vmatpush2.msra.mxu0 0.0
  %724 = vmatprep.subr.mxu0 0.0
  %725 = vmatpush2.msra.mxu0 0.0
  %726 = vmatprep.subr.mxu0 0.0
  %727 = vmatpush2.msra.mxu0 0.0
  %728 = vmatprep.mubr.f32.mxu0 0.0
  %729 = vmatmul.mubr.f32.gmra.mxu0 %v662
  %v730 = vpop.f32.mrf.mxu0
  %v731 = vadd.f32 0.0, %v730
  %v732 = vpop.f32.mrf.mxu0
  %733 = vdwg.mxu0
  %v734 = vadd.f32 %v661, %v731
  %v735 = vtanh.pop %v734
  %v736 = vxor.u32 %v734, 2147483648
  %v737 = vmul.f32 %v736, 1.442695
  %v738 = vpow.pop %v737
  %v739 = vadd.f32 %v738, 1.0
  %v740 = vrcp.pop %v739
  %v741 = vmul.f32 1.0, %v740
  %v742 = vsel %vm29, %v735, %v741
  %v743 = vmul.f32 %v742, %v649
  %745 = vrot.lane.b32.xlu0 %v742, 64
  %v746 = vpop.permute.xlu0 %745
  %v748 = vmul.f32 %v742, %v746
  %750 = vrot.lane.b32.xlu0 %v748, 32
  %v751 = vpop.permute.xlu0 %750
  %v753 = vadd.f32 %v743, %v751
  %v754 = vtanh.pop %v753
  %756 = vrot.lane.b32.xlu0 %v754, 64
  %v757 = vpop.permute.xlu0 %756
  %v759 = vmul.f32 %v742, %v757
  %761 = vrot.lane.b32.xlu0 %v759, 32
  %v762 = vpop.permute.xlu0 %761
  %764 = vst.msk [vmem:[#allocation2 + $0xc] sm:$0x3] %vm139, %v762
  %v765 = vld [vmem:[%s0 + $0xe] sm:$0x3]
  %v766 = vsel %vm35, %v762, 0
  %768 = vmatprep.subr.mxu0 0.0
  %769 = vmatpush1.msra.mxu0 0.0
  %770 = vmatprep.subr.mxu0 0.0
  %771 = vmatpush1.msra.mxu0 0.0
  %772 = vmatprep.subr.mxu0 0.0
  %773 = vmatpush1.msra.mxu0 0.0
  %774 = vmatprep.subr.mxu0 0.0
  %775 = vmatpush1.msra.mxu0 0.0
  %776 = vmatprep.subr.mxu0 0.0
  %777 = vmatpush1.msra.mxu0 0.0
  %778 = vmatprep.subr.mxu0 0.0
  %779 = vmatpush1.msra.mxu0 0.0
  %780 = vmatprep.subr.mxu0 0.0
  %781 = vmatpush1.msra.mxu0 0.0
  %782 = vmatprep.subr.mxu0 0.0
  %783 = vmatpush1.msra.mxu0 0.0
  %784 = vmatprep.subr.mxu0 0.0
  %785 = vmatpush1.msra.mxu0 0.0
  %786 = vmatprep.subr.mxu0 0.0
  %787 = vmatpush1.msra.mxu0 0.0
  %788 = vmatprep.subr.mxu0 0.0
  %789 = vmatpush1.msra.mxu0 0.0
  %790 = vmatprep.subr.mxu0 0.0
  %791 = vmatpush1.msra.mxu0 0.0
  %792 = vmatprep.subr.mxu0 0.0
  %793 = vmatpush1.msra.mxu0 %v33
  %794 = vmatprep.subr.mxu0 0.0
  %795 = vmatpush1.msra.mxu0 %v32
  %796 = vmatprep.subr.mxu0 0.0
  %797 = vmatpush1.msra.mxu0 %v31
  %798 = vmatprep.subr.mxu0 0.0
  %799 = vmatpush1.msra.mxu0 %v30
  %800 = vmatprep.subr.mxu0 0.0
  %801 = vmatpush2.msra.mxu0 0.0
  %802 = vmatprep.subr.mxu0 0.0
  %803 = vmatpush2.msra.mxu0 0.0
  %804 = vmatprep.subr.mxu0 0.0
  %805 = vmatpush2.msra.mxu0 0.0
  %806 = vmatprep.subr.mxu0 0.0
  %807 = vmatpush2.msra.mxu0 0.0
  %808 = vmatprep.subr.mxu0 0.0
  %809 = vmatpush2.msra.mxu0 0.0
  %810 = vmatprep.subr.mxu0 0.0
  %811 = vmatpush2.msra.mxu0 0.0
  %812 = vmatprep.subr.mxu0 0.0
  %813 = vmatpush2.msra.mxu0 0.0
  %814 = vmatprep.subr.mxu0 0.0
  %815 = vmatpush2.msra.mxu0 0.0
  %816 = vmatprep.subr.mxu0 0.0
  %817 = vmatpush2.msra.mxu0 0.0
  %818 = vmatprep.subr.mxu0 0.0
  %819 = vmatpush2.msra.mxu0 0.0
  %820 = vmatprep.subr.mxu0 0.0
  %821 = vmatpush2.msra.mxu0 0.0
  %822 = vmatprep.subr.mxu0 0.0
  %823 = vmatpush2.msra.mxu0 0.0
  %824 = vmatprep.subr.mxu0 0.0
  %825 = vmatpush2.msra.mxu0 0.0
  %826 = vmatprep.subr.mxu0 0.0
  %827 = vmatpush2.msra.mxu0 0.0
  %828 = vmatprep.subr.mxu0 0.0
  %829 = vmatpush2.msra.mxu0 0.0
  %830 = vmatprep.subr.mxu0 0.0
  %831 = vmatpush2.msra.mxu0 0.0
  %832 = vmatprep.mubr.f32.mxu0 0.0
  %833 = vmatmul.mubr.f32.gmra.mxu0 %v766
  %v834 = vpop.f32.mrf.mxu0
  %v835 = vadd.f32 0.0, %v834
  %v836 = vpop.f32.mrf.mxu0
  %837 = vdwg.mxu0
  %v838 = vadd.f32 %v765, %v835
  %v839 = vtanh.pop %v838
  %v840 = vxor.u32 %v838, 2147483648
  %v841 = vmul.f32 %v840, 1.442695
  %v842 = vpow.pop %v841
  %v843 = vadd.f32 %v842, 1.0
  %v844 = vrcp.pop %v843
  %v845 = vmul.f32 1.0, %v844
  %v846 = vsel %vm29, %v839, %v845
  %v847 = vmul.f32 %v846, %v753
  %849 = vrot.lane.b32.xlu0 %v846, 64
  %v850 = vpop.permute.xlu0 %849
  %v852 = vmul.f32 %v846, %v850
  %854 = vrot.lane.b32.xlu0 %v852, 32
  %v855 = vpop.permute.xlu0 %854
  %v857 = vadd.f32 %v847, %v855
  %v858 = vtanh.pop %v857
  %860 = vrot.lane.b32.xlu0 %v858, 64
  %v861 = vpop.permute.xlu0 %860
  %v863 = vmul.f32 %v846, %v861
  %865 = vrot.lane.b32.xlu0 %v863, 32
  %v866 = vpop.permute.xlu0 %865
  %868 = vst.msk [vmem:[#allocation2 + $0xe] sm:$0x3] %vm139, %v866
  %v869 = vld [vmem:[#allocation2] sm:$0xff]
  %v870 = vld [vmem:[#allocation2 + $0x8] sm:$0xff]
  %v871 = vld [vmem:[%s1] sm:$0xff]
  %v872 = vld [vmem:[%s1 + $0x8] sm:$0xff]
  %v873 = vld [vmem:[%s1 + $0x10] sm:$0xff]
  %v874 = vld [vmem:[%s1 + $0x18] sm:$0xff]
  %v875 = vld [vmem:[%s3] sm:$0x1]
  %v877 = vlaneseq
  %v878 = vshrl.u32 %v877, 7
  %v879 = vsub.s32 0, %v878
  %v880 = vrot.slane %v875, %v879
  %v883 = vsel %vm35, %v869, 0
  %v886 = vsel %vm35, %v870, 0
  %888 = vmatprep.subr.mxu0 0.0
  %889 = vmatpush1.msra.mxu0 0.0
  %890 = vmatprep.subr.mxu0 0.0
  %891 = vmatpush1.msra.mxu0 0.0
  %892 = vmatprep.subr.mxu0 0.0
  %893 = vmatpush1.msra.mxu0 0.0
  %894 = vmatprep.subr.mxu0 0.0
  %895 = vmatpush1.msra.mxu0 0.0
  %896 = vmatprep.subr.mxu0 0.0
  %897 = vmatpush1.msra.mxu0 0.0
  %898 = vmatprep.subr.mxu0 0.0
  %899 = vmatpush1.msra.mxu0 0.0
  %900 = vmatprep.subr.mxu0 0.0
  %901 = vmatpush1.msra.mxu0 0.0
  %902 = vmatprep.subr.mxu0 0.0
  %903 = vmatpush1.msra.mxu0 0.0
  %904 = vmatprep.subr.mxu0 0.0
  %905 = vmatpush1.msra.mxu0 0.0
  %906 = vmatprep.subr.mxu0 0.0
  %907 = vmatpush1.msra.mxu0 0.0
  %908 = vmatprep.subr.mxu0 0.0
  %909 = vmatpush1.msra.mxu0 0.0
  %910 = vmatprep.subr.mxu0 0.0
  %911 = vmatpush1.msra.mxu0 0.0
  %912 = vmatprep.subr.mxu0 0.0
  %913 = vmatpush1.msra.mxu0 %v874
  %914 = vmatprep.subr.mxu0 0.0
  %915 = vmatpush1.msra.mxu0 %v873
  %916 = vmatprep.subr.mxu0 0.0
  %917 = vmatpush1.msra.mxu0 %v872
  %918 = vmatprep.subr.mxu0 0.0
  %919 = vmatpush1.msra.mxu0 %v871
  %920 = vmatprep.subr.mxu0 0.0
  %921 = vmatpush2.msra.mxu0 0.0
  %922 = vmatprep.subr.mxu0 0.0
  %923 = vmatpush2.msra.mxu0 0.0
  %924 = vmatprep.subr.mxu0 0.0
  %925 = vmatpush2.msra.mxu0 0.0
  %926 = vmatprep.subr.mxu0 0.0
  %927 = vmatpush2.msra.mxu0 0.0
  %928 = vmatprep.subr.mxu0 0.0
  %929 = vmatpush2.msra.mxu0 0.0
  %930 = vmatprep.subr.mxu0 0.0
  %931 = vmatpush2.msra.mxu0 0.0
  %932 = vmatprep.subr.mxu0 0.0
  %933 = vmatpush2.msra.mxu0 0.0
  %934 = vmatprep.subr.mxu0 0.0
  %935 = vmatpush2.msra.mxu0 0.0
  %936 = vmatprep.subr.mxu0 0.0
  %937 = vmatpush2.msra.mxu0 0.0
  %938 = vmatprep.subr.mxu0 0.0
  %939 = vmatpush2.msra.mxu0 0.0
  %940 = vmatprep.subr.mxu0 0.0
  %941 = vmatpush2.msra.mxu0 0.0
  %942 = vmatprep.subr.mxu0 0.0
  %943 = vmatpush2.msra.mxu0 0.0
  %944 = vmatprep.subr.mxu0 0.0
  %945 = vmatpush2.msra.mxu0 0.0
  %946 = vmatprep.subr.mxu0 0.0
  %947 = vmatpush2.msra.mxu0 0.0
  %948 = vmatprep.subr.mxu0 0.0
  %949 = vmatpush2.msra.mxu0 0.0
  %950 = vmatprep.subr.mxu0 0.0
  %951 = vmatpush2.msra.mxu0 0.0
  %952 = vmatprep.mubr.f32.mxu0 0.0
  %953 = vmatmul.mubr.f32.gmra.mxu0 %v883
  %v954 = vpop.f32.mrf.mxu0
  %v955 = vadd.f32 %v880, %v954
  %v956 = vpop.f32.mrf.mxu0
  %957 = vmatprep.mubr.f32.mxu0 0.0
  %958 = vmatmul.mubr.f32.gmra.mxu0 %v886
  %v959 = vpop.f32.mrf.mxu0
  %v960 = vadd.f32 %v880, %v959
  %v961 = vpop.f32.mrf.mxu0
  %962 = vdwg.mxu0
  %963 = vst [vmem:[#allocation3] sm:$0xff] %v955
  %964 = vst [vmem:[#allocation3 + $0x8] sm:$0xff] %v960
  %s965 = scalar_lea.vmem %s2, 32
  %v966 = vld [vmem:[%s965] sm:$0xff]
  %v967 = vld [vmem:[%s965 + $0x8] sm:$0xff]
  %v968 = vld [vmem:[%s965 + $0x10] sm:$0xff]
  %v969 = vld [vmem:[%s965 + $0x18] sm:$0xff]
  %v970 = vld [vmem:[#allocation3] sm:$0x3]
  %971 = vmatprep.subr.mxu0 0.0
  %972 = vmatpush1.msra.mxu0 0.0
  %973 = vmatprep.subr.mxu0 0.0
  %974 = vmatpush1.msra.mxu0 0.0
  %975 = vmatprep.subr.mxu0 0.0
  %976 = vmatpush1.msra.mxu0 0.0
  %977 = vmatprep.subr.mxu0 0.0
  %978 = vmatpush1.msra.mxu0 0.0
  %979 = vmatprep.subr.mxu0 0.0
  %980 = vmatpush1.msra.mxu0 0.0
  %981 = vmatprep.subr.mxu0 0.0
  %982 = vmatpush1.msra.mxu0 0.0
  %983 = vmatprep.subr.mxu0 0.0
  %984 = vmatpush1.msra.mxu0 0.0
  %985 = vmatprep.subr.mxu0 0.0
  %986 = vmatpush1.msra.mxu0 0.0
  %987 = vmatprep.subr.mxu0 0.0
  %988 = vmatpush1.msra.mxu0 0.0
  %989 = vmatprep.subr.mxu0 0.0
  %990 = vmatpush1.msra.mxu0 0.0
  %991 = vmatprep.subr.mxu0 0.0
  %992 = vmatpush1.msra.mxu0 0.0
  %993 = vmatprep.subr.mxu0 0.0
  %994 = vmatpush1.msra.mxu0 0.0
  %995 = vmatprep.subr.mxu0 0.0
  %996 = vmatpush1.msra.mxu0 %v969
  %997 = vmatprep.subr.mxu0 0.0
  %998 = vmatpush1.msra.mxu0 %v968
  %999 = vmatprep.subr.mxu0 0.0
  %1000 = vmatpush1.msra.mxu0 %v967
  %1001 = vmatprep.subr.mxu0 0.0
  %1002 = vmatpush1.msra.mxu0 %v966
  %1003 = vmatprep.subr.mxu0 0.0
  %1004 = vmatpush2.msra.mxu0 0.0
  %1005 = vmatprep.subr.mxu0 0.0
  %1006 = vmatpush2.msra.mxu0 0.0
  %1007 = vmatprep.subr.mxu0 0.0
  %1008 = vmatpush2.msra.mxu0 0.0
  %1009 = vmatprep.subr.mxu0 0.0
  %1010 = vmatpush2.msra.mxu0 0.0
  %1011 = vmatprep.subr.mxu0 0.0
  %1012 = vmatpush2.msra.mxu0 0.0
  %1013 = vmatprep.subr.mxu0 0.0
  %1014 = vmatpush2.msra.mxu0 0.0
  %1015 = vmatprep.subr.mxu0 0.0
  %1016 = vmatpush2.msra.mxu0 0.0
  %1017 = vmatprep.subr.mxu0 0.0
  %1018 = vmatpush2.msra.mxu0 0.0
  %1019 = vmatprep.subr.mxu0 0.0
  %1020 = vmatpush2.msra.mxu0 0.0
  %1021 = vmatprep.subr.mxu0 0.0
  %1022 = vmatpush2.msra.mxu0 0.0
  %1023 = vmatprep.subr.mxu0 0.0
  %1024 = vmatpush2.msra.mxu0 0.0
  %1025 = vmatprep.subr.mxu0 0.0
  %1026 = vmatpush2.msra.mxu0 0.0
  %1027 = vmatprep.subr.mxu0 0.0
  %1028 = vmatpush2.msra.mxu0 0.0
  %1029 = vmatprep.subr.mxu0 0.0
  %1030 = vmatpush2.msra.mxu0 0.0
  %1031 = vmatprep.subr.mxu0 0.0
  %1032 = vmatpush2.msra.mxu0 0.0
  %1033 = vmatprep.subr.mxu0 0.0
  %1034 = vmatpush2.msra.mxu0 0.0
  %1035 = vmatprep.mubr.f32.mxu0 0.0
  %1036 = vmatmul.mubr.f32.gmra.mxu0 %v37
  %v1037 = vpop.f32.mrf.mxu0
  %v1038 = vadd.f32 0.0, %v1037
  %v1039 = vpop.f32.mrf.mxu0
  %1040 = vdwg.mxu0
  %v1041 = vadd.f32 %v970, %v1038
  %v1042 = vtanh.pop %v1041
  %v1043 = vxor.u32 %v1041, 2147483648
  %v1044 = vmul.f32 %v1043, 1.442695
  %v1045 = vpow.pop %v1044
  %v1046 = vadd.f32 %v1045, 1.0
  %v1047 = vrcp.pop %v1046
  %v1048 = vmul.f32 1.0, %v1047
  %v1049 = vsel %vm29, %v1042, %v1048
  %v1050 = vmul.f32 %v1049, 0.0
  %1052 = vrot.lane.b32.xlu0 %v1049, 64
  %v1053 = vpop.permute.xlu0 %1052
  %v1055 = vmul.f32 %v1049, %v1053
  %1057 = vrot.lane.b32.xlu0 %v1055, 32
  %v1058 = vpop.permute.xlu0 %1057
  %v1060 = vadd.f32 %v1050, %v1058
  %v1061 = vtanh.pop %v1060
  %1063 = vrot.lane.b32.xlu0 %v1061, 64
  %v1064 = vpop.permute.xlu0 %1063
  %v1066 = vmul.f32 %v1049, %v1064
  %v1067 = vld [vmem:[#allocation3 + $0x2] sm:$0x3]
  %1069 = vrot.lane.b32.xlu0 %v1066, 32
  %v1070 = vpop.permute.xlu0 %1069
  %v1071 = vsel %vm35, %v1070, 0
  %1073 = vmatprep.subr.mxu0 0.0
  %1074 = vmatpush1.msra.mxu0 0.0
  %1075 = vmatprep.subr.mxu0 0.0
  %1076 = vmatpush1.msra.mxu0 0.0
  %1077 = vmatprep.subr.mxu0 0.0
  %1078 = vmatpush1.msra.mxu0 0.0
  %1079 = vmatprep.subr.mxu0 0.0
  %1080 = vmatpush1.msra.mxu0 0.0
  %1081 = vmatprep.subr.mxu0 0.0
  %1082 = vmatpush1.msra.mxu0 0.0
  %1083 = vmatprep.subr.mxu0 0.0
  %1084 = vmatpush1.msra.mxu0 0.0
  %1085 = vmatprep.subr.mxu0 0.0
  %1086 = vmatpush1.msra.mxu0 0.0
  %1087 = vmatprep.subr.mxu0 0.0
  %1088 = vmatpush1.msra.mxu0 0.0
  %1089 = vmatprep.subr.mxu0 0.0
  %1090 = vmatpush1.msra.mxu0 0.0
  %1091 = vmatprep.subr.mxu0 0.0
  %1092 = vmatpush1.msra.mxu0 0.0
  %1093 = vmatprep.subr.mxu0 0.0
  %1094 = vmatpush1.msra.mxu0 0.0
  %1095 = vmatprep.subr.mxu0 0.0
  %1096 = vmatpush1.msra.mxu0 0.0
  %1097 = vmatprep.subr.mxu0 0.0
  %1098 = vmatpush1.msra.mxu0 %v969
  %1099 = vmatprep.subr.mxu0 0.0
  %1100 = vmatpush1.msra.mxu0 %v968
  %1101 = vmatprep.subr.mxu0 0.0
  %1102 = vmatpush1.msra.mxu0 %v967
  %1103 = vmatprep.subr.mxu0 0.0
  %1104 = vmatpush1.msra.mxu0 %v966
  %1105 = vmatprep.subr.mxu0 0.0
  %1106 = vmatpush2.msra.mxu0 0.0
  %1107 = vmatprep.subr.mxu0 0.0
  %1108 = vmatpush2.msra.mxu0 0.0
  %1109 = vmatprep.subr.mxu0 0.0
  %1110 = vmatpush2.msra.mxu0 0.0
  %1111 = vmatprep.subr.mxu0 0.0
  %1112 = vmatpush2.msra.mxu0 0.0
  %1113 = vmatprep.subr.mxu0 0.0
  %1114 = vmatpush2.msra.mxu0 0.0
  %1115 = vmatprep.subr.mxu0 0.0
  %1116 = vmatpush2.msra.mxu0 0.0
  %1117 = vmatprep.subr.mxu0 0.0
  %1118 = vmatpush2.msra.mxu0 0.0
  %1119 = vmatprep.subr.mxu0 0.0
  %1120 = vmatpush2.msra.mxu0 0.0
  %1121 = vmatprep.subr.mxu0 0.0
  %1122 = vmatpush2.msra.mxu0 0.0
  %1123 = vmatprep.subr.mxu0 0.0
  %1124 = vmatpush2.msra.mxu0 0.0
  %1125 = vmatprep.subr.mxu0 0.0
  %1126 = vmatpush2.msra.mxu0 0.0
  %1127 = vmatprep.subr.mxu0 0.0
  %1128 = vmatpush2.msra.mxu0 0.0
  %1129 = vmatprep.subr.mxu0 0.0
  %1130 = vmatpush2.msra.mxu0 0.0
  %1131 = vmatprep.subr.mxu0 0.0
  %1132 = vmatpush2.msra.mxu0 0.0
  %1133 = vmatprep.subr.mxu0 0.0
  %1134 = vmatpush2.msra.mxu0 0.0
  %1135 = vmatprep.subr.mxu0 0.0
  %1136 = vmatpush2.msra.mxu0 0.0
  %1137 = vmatprep.mubr.f32.mxu0 0.0
  %1138 = vmatmul.mubr.f32.gmra.mxu0 %v1071
  %v1139 = vpop.f32.mrf.mxu0
  %v1140 = vadd.f32 0.0, %v1139
  %v1141 = vpop.f32.mrf.mxu0
  %1142 = vdwg.mxu0
  %v1143 = vadd.f32 %v1067, %v1140
  %v1144 = vtanh.pop %v1143
  %v1145 = vxor.u32 %v1143, 2147483648
  %v1146 = vmul.f32 %v1145, 1.442695
  %v1147 = vpow.pop %v1146
  %v1148 = vadd.f32 %v1147, 1.0
  %v1149 = vrcp.pop %v1148
  %v1150 = vmul.f32 1.0, %v1149
  %v1151 = vsel %vm29, %v1144, %v1150
  %v1152 = vmul.f32 %v1151, %v1060
  %1154 = vrot.lane.b32.xlu0 %v1151, 64
  %v1155 = vpop.permute.xlu0 %1154
  %v1157 = vmul.f32 %v1151, %v1155
  %1159 = vrot.lane.b32.xlu0 %v1157, 32
  %v1160 = vpop.permute.xlu0 %1159
  %v1162 = vadd.f32 %v1152, %v1160
  %v1163 = vtanh.pop %v1162
  %1165 = vrot.lane.b32.xlu0 %v1163, 64
  %v1166 = vpop.permute.xlu0 %1165
  %v1168 = vmul.f32 %v1151, %v1166
  %v1169 = vld [vmem:[#allocation3 + $0x4] sm:$0x3]
  %1171 = vrot.lane.b32.xlu0 %v1168, 32
  %v1172 = vpop.permute.xlu0 %1171
  %v1173 = vsel %vm35, %v1172, 0
  %1175 = vmatprep.subr.mxu0 0.0
  %1176 = vmatpush1.msra.mxu0 0.0
  %1177 = vmatprep.subr.mxu0 0.0
  %1178 = vmatpush1.msra.mxu0 0.0
  %1179 = vmatprep.subr.mxu0 0.0
  %1180 = vmatpush1.msra.mxu0 0.0
  %1181 = vmatprep.subr.mxu0 0.0
  %1182 = vmatpush1.msra.mxu0 0.0
  %1183 = vmatprep.subr.mxu0 0.0
  %1184 = vmatpush1.msra.mxu0 0.0
  %1185 = vmatprep.subr.mxu0 0.0
  %1186 = vmatpush1.msra.mxu0 0.0
  %1187 = vmatprep.subr.mxu0 0.0
  %1188 = vmatpush1.msra.mxu0 0.0
  %1189 = vmatprep.subr.mxu0 0.0
  %1190 = vmatpush1.msra.mxu0 0.0
  %1191 = vmatprep.subr.mxu0 0.0
  %1192 = vmatpush1.msra.mxu0 0.0
  %1193 = vmatprep.subr.mxu0 0.0
  %1194 = vmatpush1.msra.mxu0 0.0
  %1195 = vmatprep.subr.mxu0 0.0
  %1196 = vmatpush1.msra.mxu0 0.0
  %1197 = vmatprep.subr.mxu0 0.0
  %1198 = vmatpush1.msra.mxu0 0.0
  %1199 = vmatprep.subr.mxu0 0.0
  %1200 = vmatpush1.msra.mxu0 %v969
  %1201 = vmatprep.subr.mxu0 0.0
  %1202 = vmatpush1.msra.mxu0 %v968
  %1203 = vmatprep.subr.mxu0 0.0
  %1204 = vmatpush1.msra.mxu0 %v967
  %1205 = vmatprep.subr.mxu0 0.0
  %1206 = vmatpush1.msra.mxu0 %v966
  %1207 = vmatprep.subr.mxu0 0.0
  %1208 = vmatpush2.msra.mxu0 0.0
  %1209 = vmatprep.subr.mxu0 0.0
  %1210 = vmatpush2.msra.mxu0 0.0
  %1211 = vmatprep.subr.mxu0 0.0
  %1212 = vmatpush2.msra.mxu0 0.0
  %1213 = vmatprep.subr.mxu0 0.0
  %1214 = vmatpush2.msra.mxu0 0.0
  %1215 = vmatprep.subr.mxu0 0.0
  %1216 = vmatpush2.msra.mxu0 0.0
  %1217 = vmatprep.subr.mxu0 0.0
  %1218 = vmatpush2.msra.mxu0 0.0
  %1219 = vmatprep.subr.mxu0 0.0
  %1220 = vmatpush2.msra.mxu0 0.0
  %1221 = vmatprep.subr.mxu0 0.0
  %1222 = vmatpush2.msra.mxu0 0.0
  %1223 = vmatprep.subr.mxu0 0.0
  %1224 = vmatpush2.msra.mxu0 0.0
  %1225 = vmatprep.subr.mxu0 0.0
  %1226 = vmatpush2.msra.mxu0 0.0
  %1227 = vmatprep.subr.mxu0 0.0
  %1228 = vmatpush2.msra.mxu0 0.0
  %1229 = vmatprep.subr.mxu0 0.0
  %1230 = vmatpush2.msra.mxu0 0.0
  %1231 = vmatprep.subr.mxu0 0.0
  %1232 = vmatpush2.msra.mxu0 0.0
  %1233 = vmatprep.subr.mxu0 0.0
  %1234 = vmatpush2.msra.mxu0 0.0
  %1235 = vmatprep.subr.mxu0 0.0
  %1236 = vmatpush2.msra.mxu0 0.0
  %1237 = vmatprep.subr.mxu0 0.0
  %1238 = vmatpush2.msra.mxu0 0.0
  %1239 = vmatprep.mubr.f32.mxu0 0.0
  %1240 = vmatmul.mubr.f32.gmra.mxu0 %v1173
  %v1241 = vpop.f32.mrf.mxu0
  %v1242 = vadd.f32 0.0, %v1241
  %v1243 = vpop.f32.mrf.mxu0
  %1244 = vdwg.mxu0
  %v1245 = vadd.f32 %v1169, %v1242
  %v1246 = vtanh.pop %v1245
  %v1247 = vxor.u32 %v1245, 2147483648
  %v1248 = vmul.f32 %v1247, 1.442695
  %v1249 = vpow.pop %v1248
  %v1250 = vadd.f32 %v1249, 1.0
  %v1251 = vrcp.pop %v1250
  %v1252 = vmul.f32 1.0, %v1251
  %v1253 = vsel %vm29, %v1246, %v1252
  %v1254 = vmul.f32 %v1253, %v1162
  %1256 = vrot.lane.b32.xlu0 %v1253, 64
  %v1257 = vpop.permute.xlu0 %1256
  %v1259 = vmul.f32 %v1253, %v1257
  %1261 = vrot.lane.b32.xlu0 %v1259, 32
  %v1262 = vpop.permute.xlu0 %1261
  %v1264 = vadd.f32 %v1254, %v1262
  %v1265 = vtanh.pop %v1264
  %1267 = vrot.lane.b32.xlu0 %v1265, 64
  %v1268 = vpop.permute.xlu0 %1267
  %v1270 = vmul.f32 %v1253, %v1268
  %v1271 = vld [vmem:[#allocation3 + $0x6] sm:$0x3]
  %1273 = vrot.lane.b32.xlu0 %v1270, 32
  %v1274 = vpop.permute.xlu0 %1273
  %v1275 = vsel %vm35, %v1274, 0
  %1277 = vmatprep.subr.mxu0 0.0
  %1278 = vmatpush1.msra.mxu0 0.0
  %1279 = vmatprep.subr.mxu0 0.0
  %1280 = vmatpush1.msra.mxu0 0.0
  %1281 = vmatprep.subr.mxu0 0.0
  %1282 = vmatpush1.msra.mxu0 0.0
  %1283 = vmatprep.subr.mxu0 0.0
  %1284 = vmatpush1.msra.mxu0 0.0
  %1285 = vmatprep.subr.mxu0 0.0
  %1286 = vmatpush1.msra.mxu0 0.0
  %1287 = vmatprep.subr.mxu0 0.0
  %1288 = vmatpush1.msra.mxu0 0.0
  %1289 = vmatprep.subr.mxu0 0.0
  %1290 = vmatpush1.msra.mxu0 0.0
  %1291 = vmatprep.subr.mxu0 0.0
  %1292 = vmatpush1.msra.mxu0 0.0
  %1293 = vmatprep.subr.mxu0 0.0
  %1294 = vmatpush1.msra.mxu0 0.0
  %1295 = vmatprep.subr.mxu0 0.0
  %1296 = vmatpush1.msra.mxu0 0.0
  %1297 = vmatprep.subr.mxu0 0.0
  %1298 = vmatpush1.msra.mxu0 0.0
  %1299 = vmatprep.subr.mxu0 0.0
  %1300 = vmatpush1.msra.mxu0 0.0
  %1301 = vmatprep.subr.mxu0 0.0
  %1302 = vmatpush1.msra.mxu0 %v969
  %1303 = vmatprep.subr.mxu0 0.0
  %1304 = vmatpush1.msra.mxu0 %v968
  %1305 = vmatprep.subr.mxu0 0.0
  %1306 = vmatpush1.msra.mxu0 %v967
  %1307 = vmatprep.subr.mxu0 0.0
  %1308 = vmatpush1.msra.mxu0 %v966
  %1309 = vmatprep.subr.mxu0 0.0
  %1310 = vmatpush2.msra.mxu0 0.0
  %1311 = vmatprep.subr.mxu0 0.0
  %1312 = vmatpush2.msra.mxu0 0.0
  %1313 = vmatprep.subr.mxu0 0.0
  %1314 = vmatpush2.msra.mxu0 0.0
  %1315 = vmatprep.subr.mxu0 0.0
  %1316 = vmatpush2.msra.mxu0 0.0
  %1317 = vmatprep.subr.mxu0 0.0
  %1318 = vmatpush2.msra.mxu0 0.0
  %1319 = vmatprep.subr.mxu0 0.0
  %1320 = vmatpush2.msra.mxu0 0.0
  %1321 = vmatprep.subr.mxu0 0.0
  %1322 = vmatpush2.msra.mxu0 0.0
  %1323 = vmatprep.subr.mxu0 0.0
  %1324 = vmatpush2.msra.mxu0 0.0
  %1325 = vmatprep.subr.mxu0 0.0
  %1326 = vmatpush2.msra.mxu0 0.0
  %1327 = vmatprep.subr.mxu0 0.0
  %1328 = vmatpush2.msra.mxu0 0.0
  %1329 = vmatprep.subr.mxu0 0.0
  %1330 = vmatpush2.msra.mxu0 0.0
  %1331 = vmatprep.subr.mxu0 0.0
  %1332 = vmatpush2.msra.mxu0 0.0
  %1333 = vmatprep.subr.mxu0 0.0
  %1334 = vmatpush2.msra.mxu0 0.0
  %1335 = vmatprep.subr.mxu0 0.0
  %1336 = vmatpush2.msra.mxu0 0.0
  %1337 = vmatprep.subr.mxu0 0.0
  %1338 = vmatpush2.msra.mxu0 0.0
  %1339 = vmatprep.subr.mxu0 0.0
  %1340 = vmatpush2.msra.mxu0 0.0
  %1341 = vmatprep.mubr.f32.mxu0 0.0
  %1342 = vmatmul.mubr.f32.gmra.mxu0 %v1275
  %v1343 = vpop.f32.mrf.mxu0
  %v1344 = vadd.f32 0.0, %v1343
  %v1345 = vpop.f32.mrf.mxu0
  %1346 = vdwg.mxu0
  %v1347 = vadd.f32 %v1271, %v1344
  %v1348 = vtanh.pop %v1347
  %v1349 = vxor.u32 %v1347, 2147483648
  %v1350 = vmul.f32 %v1349, 1.442695
  %v1351 = vpow.pop %v1350
  %v1352 = vadd.f32 %v1351, 1.0
  %v1353 = vrcp.pop %v1352
  %v1354 = vmul.f32 1.0, %v1353
  %v1355 = vsel %vm29, %v1348, %v1354
  %v1356 = vmul.f32 %v1355, %v1264
  %1358 = vrot.lane.b32.xlu0 %v1355, 64
  %v1359 = vpop.permute.xlu0 %1358
  %v1361 = vmul.f32 %v1355, %v1359
  %1363 = vrot.lane.b32.xlu0 %v1361, 32
  %v1364 = vpop.permute.xlu0 %1363
  %v1366 = vadd.f32 %v1356, %v1364
  %v1367 = vtanh.pop %v1366
  %1369 = vrot.lane.b32.xlu0 %v1367, 64
  %v1370 = vpop.permute.xlu0 %1369
  %v1372 = vmul.f32 %v1355, %v1370
  %v1373 = vld [vmem:[#allocation3 + $0x8] sm:$0x3]
  %1375 = vrot.lane.b32.xlu0 %v1372, 32
  %v1376 = vpop.permute.xlu0 %1375
  %v1377 = vsel %vm35, %v1376, 0
  %1379 = vmatprep.subr.mxu0 0.0
  %1380 = vmatpush1.msra.mxu0 0.0
  %1381 = vmatprep.subr.mxu0 0.0
  %1382 = vmatpush1.msra.mxu0 0.0
  %1383 = vmatprep.subr.mxu0 0.0
  %1384 = vmatpush1.msra.mxu0 0.0
  %1385 = vmatprep.subr.mxu0 0.0
  %1386 = vmatpush1.msra.mxu0 0.0
  %1387 = vmatprep.subr.mxu0 0.0
  %1388 = vmatpush1.msra.mxu0 0.0
  %1389 = vmatprep.subr.mxu0 0.0
  %1390 = vmatpush1.msra.mxu0 0.0
  %1391 = vmatprep.subr.mxu0 0.0
  %1392 = vmatpush1.msra.mxu0 0.0
  %1393 = vmatprep.subr.mxu0 0.0
  %1394 = vmatpush1.msra.mxu0 0.0
  %1395 = vmatprep.subr.mxu0 0.0
  %1396 = vmatpush1.msra.mxu0 0.0
  %1397 = vmatprep.subr.mxu0 0.0
  %1398 = vmatpush1.msra.mxu0 0.0
  %1399 = vmatprep.subr.mxu0 0.0
  %1400 = vmatpush1.msra.mxu0 0.0
  %1401 = vmatprep.subr.mxu0 0.0
  %1402 = vmatpush1.msra.mxu0 0.0
  %1403 = vmatprep.subr.mxu0 0.0
  %1404 = vmatpush1.msra.mxu0 %v969
  %1405 = vmatprep.subr.mxu0 0.0
  %1406 = vmatpush1.msra.mxu0 %v968
  %1407 = vmatprep.subr.mxu0 0.0
  %1408 = vmatpush1.msra.mxu0 %v967
  %1409 = vmatprep.subr.mxu0 0.0
  %1410 = vmatpush1.msra.mxu0 %v966
  %1411 = vmatprep.subr.mxu0 0.0
  %1412 = vmatpush2.msra.mxu0 0.0
  %1413 = vmatprep.subr.mxu0 0.0
  %1414 = vmatpush2.msra.mxu0 0.0
  %1415 = vmatprep.subr.mxu0 0.0
  %1416 = vmatpush2.msra.mxu0 0.0
  %1417 = vmatprep.subr.mxu0 0.0
  %1418 = vmatpush2.msra.mxu0 0.0
  %1419 = vmatprep.subr.mxu0 0.0
  %1420 = vmatpush2.msra.mxu0 0.0
  %1421 = vmatprep.subr.mxu0 0.0
  %1422 = vmatpush2.msra.mxu0 0.0
  %1423 = vmatprep.subr.mxu0 0.0
  %1424 = vmatpush2.msra.mxu0 0.0
  %1425 = vmatprep.subr.mxu0 0.0
  %1426 = vmatpush2.msra.mxu0 0.0
  %1427 = vmatprep.subr.mxu0 0.0
  %1428 = vmatpush2.msra.mxu0 0.0
  %1429 = vmatprep.subr.mxu0 0.0
  %1430 = vmatpush2.msra.mxu0 0.0
  %1431 = vmatprep.subr.mxu0 0.0
  %1432 = vmatpush2.msra.mxu0 0.0
  %1433 = vmatprep.subr.mxu0 0.0
  %1434 = vmatpush2.msra.mxu0 0.0
  %1435 = vmatprep.subr.mxu0 0.0
  %1436 = vmatpush2.msra.mxu0 0.0
  %1437 = vmatprep.subr.mxu0 0.0
  %1438 = vmatpush2.msra.mxu0 0.0
  %1439 = vmatprep.subr.mxu0 0.0
  %1440 = vmatpush2.msra.mxu0 0.0
  %1441 = vmatprep.subr.mxu0 0.0
  %1442 = vmatpush2.msra.mxu0 0.0
  %1443 = vmatprep.mubr.f32.mxu0 0.0
  %1444 = vmatmul.mubr.f32.gmra.mxu0 %v1377
  %v1445 = vpop.f32.mrf.mxu0
  %v1446 = vadd.f32 0.0, %v1445
  %v1447 = vpop.f32.mrf.mxu0
  %1448 = vdwg.mxu0
  %v1449 = vadd.f32 %v1373, %v1446
  %v1450 = vtanh.pop %v1449
  %v1451 = vxor.u32 %v1449, 2147483648
  %v1452 = vmul.f32 %v1451, 1.442695
  %v1453 = vpow.pop %v1452
  %v1454 = vadd.f32 %v1453, 1.0
  %v1455 = vrcp.pop %v1454
  %v1456 = vmul.f32 1.0, %v1455
  %v1457 = vsel %vm29, %v1450, %v1456
  %v1458 = vmul.f32 %v1457, %v1366
  %1460 = vrot.lane.b32.xlu0 %v1457, 64
  %v1461 = vpop.permute.xlu0 %1460
  %v1463 = vmul.f32 %v1457, %v1461
  %1465 = vrot.lane.b32.xlu0 %v1463, 32
  %v1466 = vpop.permute.xlu0 %1465
  %v1468 = vadd.f32 %v1458, %v1466
  %v1469 = vtanh.pop %v1468
  %1471 = vrot.lane.b32.xlu0 %v1469, 64
  %v1472 = vpop.permute.xlu0 %1471
  %v1474 = vmul.f32 %v1457, %v1472
  %v1475 = vld [vmem:[#allocation3 + $0xa] sm:$0x3]
  %1477 = vrot.lane.b32.xlu0 %v1474, 32
  %v1478 = vpop.permute.xlu0 %1477
  %v1479 = vsel %vm35, %v1478, 0
  %1481 = vmatprep.subr.mxu0 0.0
  %1482 = vmatpush1.msra.mxu0 0.0
  %1483 = vmatprep.subr.mxu0 0.0
  %1484 = vmatpush1.msra.mxu0 0.0
  %1485 = vmatprep.subr.mxu0 0.0
  %1486 = vmatpush1.msra.mxu0 0.0
  %1487 = vmatprep.subr.mxu0 0.0
  %1488 = vmatpush1.msra.mxu0 0.0
  %1489 = vmatprep.subr.mxu0 0.0
  %1490 = vmatpush1.msra.mxu0 0.0
  %1491 = vmatprep.subr.mxu0 0.0
  %1492 = vmatpush1.msra.mxu0 0.0
  %1493 = vmatprep.subr.mxu0 0.0
  %1494 = vmatpush1.msra.mxu0 0.0
  %1495 = vmatprep.subr.mxu0 0.0
  %1496 = vmatpush1.msra.mxu0 0.0
  %1497 = vmatprep.subr.mxu0 0.0
  %1498 = vmatpush1.msra.mxu0 0.0
  %1499 = vmatprep.subr.mxu0 0.0
  %1500 = vmatpush1.msra.mxu0 0.0
  %1501 = vmatprep.subr.mxu0 0.0
  %1502 = vmatpush1.msra.mxu0 0.0
  %1503 = vmatprep.subr.mxu0 0.0
  %1504 = vmatpush1.msra.mxu0 0.0
  %1505 = vmatprep.subr.mxu0 0.0
  %1506 = vmatpush1.msra.mxu0 %v969
  %1507 = vmatprep.subr.mxu0 0.0
  %1508 = vmatpush1.msra.mxu0 %v968
  %1509 = vmatprep.subr.mxu0 0.0
  %1510 = vmatpush1.msra.mxu0 %v967
  %1511 = vmatprep.subr.mxu0 0.0
  %1512 = vmatpush1.msra.mxu0 %v966
  %1513 = vmatprep.subr.mxu0 0.0
  %1514 = vmatpush2.msra.mxu0 0.0
  %1515 = vmatprep.subr.mxu0 0.0
  %1516 = vmatpush2.msra.mxu0 0.0
  %1517 = vmatprep.subr.mxu0 0.0
  %1518 = vmatpush2.msra.mxu0 0.0
  %1519 = vmatprep.subr.mxu0 0.0
  %1520 = vmatpush2.msra.mxu0 0.0
  %1521 = vmatprep.subr.mxu0 0.0
  %1522 = vmatpush2.msra.mxu0 0.0
  %1523 = vmatprep.subr.mxu0 0.0
  %1524 = vmatpush2.msra.mxu0 0.0
  %1525 = vmatprep.subr.mxu0 0.0
  %1526 = vmatpush2.msra.mxu0 0.0
  %1527 = vmatprep.subr.mxu0 0.0
  %1528 = vmatpush2.msra.mxu0 0.0
  %1529 = vmatprep.subr.mxu0 0.0
  %1530 = vmatpush2.msra.mxu0 0.0
  %1531 = vmatprep.subr.mxu0 0.0
  %1532 = vmatpush2.msra.mxu0 0.0
  %1533 = vmatprep.subr.mxu0 0.0
  %1534 = vmatpush2.msra.mxu0 0.0
  %1535 = vmatprep.subr.mxu0 0.0
  %1536 = vmatpush2.msra.mxu0 0.0
  %1537 = vmatprep.subr.mxu0 0.0
  %1538 = vmatpush2.msra.mxu0 0.0
  %1539 = vmatprep.subr.mxu0 0.0
  %1540 = vmatpush2.msra.mxu0 0.0
  %1541 = vmatprep.subr.mxu0 0.0
  %1542 = vmatpush2.msra.mxu0 0.0
  %1543 = vmatprep.subr.mxu0 0.0
  %1544 = vmatpush2.msra.mxu0 0.0
  %1545 = vmatprep.mubr.f32.mxu0 0.0
  %1546 = vmatmul.mubr.f32.gmra.mxu0 %v1479
  %v1547 = vpop.f32.mrf.mxu0
  %v1548 = vadd.f32 0.0, %v1547
  %v1549 = vpop.f32.mrf.mxu0
  %1550 = vdwg.mxu0
  %v1551 = vadd.f32 %v1475, %v1548
  %v1552 = vtanh.pop %v1551
  %v1553 = vxor.u32 %v1551, 2147483648
  %v1554 = vmul.f32 %v1553, 1.442695
  %v1555 = vpow.pop %v1554
  %v1556 = vadd.f32 %v1555, 1.0
  %v1557 = vrcp.pop %v1556
  %v1558 = vmul.f32 1.0, %v1557
  %v1559 = vsel %vm29, %v1552, %v1558
  %v1560 = vmul.f32 %v1559, %v1468
  %1562 = vrot.lane.b32.xlu0 %v1559, 64
  %v1563 = vpop.permute.xlu0 %1562
  %v1565 = vmul.f32 %v1559, %v1563
  %1567 = vrot.lane.b32.xlu0 %v1565, 32
  %v1568 = vpop.permute.xlu0 %1567
  %v1570 = vadd.f32 %v1560, %v1568
  %v1571 = vtanh.pop %v1570
  %1573 = vrot.lane.b32.xlu0 %v1571, 64
  %v1574 = vpop.permute.xlu0 %1573
  %v1576 = vmul.f32 %v1559, %v1574
  %v1577 = vld [vmem:[#allocation3 + $0xc] sm:$0x3]
  %1579 = vrot.lane.b32.xlu0 %v1576, 32
  %v1580 = vpop.permute.xlu0 %1579
  %v1581 = vsel %vm35, %v1580, 0
  %1583 = vmatprep.subr.mxu0 0.0
  %1584 = vmatpush1.msra.mxu0 0.0
  %1585 = vmatprep.subr.mxu0 0.0
  %1586 = vmatpush1.msra.mxu0 0.0
  %1587 = vmatprep.subr.mxu0 0.0
  %1588 = vmatpush1.msra.mxu0 0.0
  %1589 = vmatprep.subr.mxu0 0.0
  %1590 = vmatpush1.msra.mxu0 0.0
  %1591 = vmatprep.subr.mxu0 0.0
  %1592 = vmatpush1.msra.mxu0 0.0
  %1593 = vmatprep.subr.mxu0 0.0
  %1594 = vmatpush1.msra.mxu0 0.0
  %1595 = vmatprep.subr.mxu0 0.0
  %1596 = vmatpush1.msra.mxu0 0.0
  %1597 = vmatprep.subr.mxu0 0.0
  %1598 = vmatpush1.msra.mxu0 0.0
  %1599 = vmatprep.subr.mxu0 0.0
  %1600 = vmatpush1.msra.mxu0 0.0
  %1601 = vmatprep.subr.mxu0 0.0
  %1602 = vmatpush1.msra.mxu0 0.0
  %1603 = vmatprep.subr.mxu0 0.0
  %1604 = vmatpush1.msra.mxu0 0.0
  %1605 = vmatprep.subr.mxu0 0.0
  %1606 = vmatpush1.msra.mxu0 0.0
  %1607 = vmatprep.subr.mxu0 0.0
  %1608 = vmatpush1.msra.mxu0 %v969
  %1609 = vmatprep.subr.mxu0 0.0
  %1610 = vmatpush1.msra.mxu0 %v968
  %1611 = vmatprep.subr.mxu0 0.0
  %1612 = vmatpush1.msra.mxu0 %v967
  %1613 = vmatprep.subr.mxu0 0.0
  %1614 = vmatpush1.msra.mxu0 %v966
  %1615 = vmatprep.subr.mxu0 0.0
  %1616 = vmatpush2.msra.mxu0 0.0
  %1617 = vmatprep.subr.mxu0 0.0
  %1618 = vmatpush2.msra.mxu0 0.0
  %1619 = vmatprep.subr.mxu0 0.0
  %1620 = vmatpush2.msra.mxu0 0.0
  %1621 = vmatprep.subr.mxu0 0.0
  %1622 = vmatpush2.msra.mxu0 0.0
  %1623 = vmatprep.subr.mxu0 0.0
  %1624 = vmatpush2.msra.mxu0 0.0
  %1625 = vmatprep.subr.mxu0 0.0
  %1626 = vmatpush2.msra.mxu0 0.0
  %1627 = vmatprep.subr.mxu0 0.0
  %1628 = vmatpush2.msra.mxu0 0.0
  %1629 = vmatprep.subr.mxu0 0.0
  %1630 = vmatpush2.msra.mxu0 0.0
  %1631 = vmatprep.subr.mxu0 0.0
  %1632 = vmatpush2.msra.mxu0 0.0
  %1633 = vmatprep.subr.mxu0 0.0
  %1634 = vmatpush2.msra.mxu0 0.0
  %1635 = vmatprep.subr.mxu0 0.0
  %1636 = vmatpush2.msra.mxu0 0.0
  %1637 = vmatprep.subr.mxu0 0.0
  %1638 = vmatpush2.msra.mxu0 0.0
  %1639 = vmatprep.subr.mxu0 0.0
  %1640 = vmatpush2.msra.mxu0 0.0
  %1641 = vmatprep.subr.mxu0 0.0
  %1642 = vmatpush2.msra.mxu0 0.0
  %1643 = vmatprep.subr.mxu0 0.0
  %1644 = vmatpush2.msra.mxu0 0.0
  %1645 = vmatprep.subr.mxu0 0.0
  %1646 = vmatpush2.msra.mxu0 0.0
  %1647 = vmatprep.mubr.f32.mxu0 0.0
  %1648 = vmatmul.mubr.f32.gmra.mxu0 %v1581
  %v1649 = vpop.f32.mrf.mxu0
  %v1650 = vadd.f32 0.0, %v1649
  %v1651 = vpop.f32.mrf.mxu0
  %1652 = vdwg.mxu0
  %v1653 = vadd.f32 %v1577, %v1650
  %v1654 = vtanh.pop %v1653
  %v1655 = vxor.u32 %v1653, 2147483648
  %v1656 = vmul.f32 %v1655, 1.442695
  %v1657 = vpow.pop %v1656
  %v1658 = vadd.f32 %v1657, 1.0
  %v1659 = vrcp.pop %v1658
  %v1660 = vmul.f32 1.0, %v1659
  %v1661 = vsel %vm29, %v1654, %v1660
  %v1662 = vmul.f32 %v1661, %v1570
  %1664 = vrot.lane.b32.xlu0 %v1661, 64
  %v1665 = vpop.permute.xlu0 %1664
  %v1667 = vmul.f32 %v1661, %v1665
  %1669 = vrot.lane.b32.xlu0 %v1667, 32
  %v1670 = vpop.permute.xlu0 %1669
  %v1672 = vadd.f32 %v1662, %v1670
  %v1673 = vtanh.pop %v1672
  %1675 = vrot.lane.b32.xlu0 %v1673, 64
  %v1676 = vpop.permute.xlu0 %1675
  %v1678 = vmul.f32 %v1661, %v1676
  %v1679 = vld [vmem:[#allocation3 + $0xe] sm:$0x3]
  %1681 = vrot.lane.b32.xlu0 %v1678, 32
  %v1682 = vpop.permute.xlu0 %1681
  %v1683 = vsel %vm35, %v1682, 0
  %1685 = vmatprep.subr.mxu0 0.0
  %1686 = vmatpush1.msra.mxu0 0.0
  %1687 = vmatprep.subr.mxu0 0.0
  %1688 = vmatpush1.msra.mxu0 0.0
  %1689 = vmatprep.subr.mxu0 0.0
  %1690 = vmatpush1.msra.mxu0 0.0
  %1691 = vmatprep.subr.mxu0 0.0
  %1692 = vmatpush1.msra.mxu0 0.0
  %1693 = vmatprep.subr.mxu0 0.0
  %1694 = vmatpush1.msra.mxu0 0.0
  %1695 = vmatprep.subr.mxu0 0.0
  %1696 = vmatpush1.msra.mxu0 0.0
  %1697 = vmatprep.subr.mxu0 0.0
  %1698 = vmatpush1.msra.mxu0 0.0
  %1699 = vmatprep.subr.mxu0 0.0
  %1700 = vmatpush1.msra.mxu0 0.0
  %1701 = vmatprep.subr.mxu0 0.0
  %1702 = vmatpush1.msra.mxu0 0.0
  %1703 = vmatprep.subr.mxu0 0.0
  %1704 = vmatpush1.msra.mxu0 0.0
  %1705 = vmatprep.subr.mxu0 0.0
  %1706 = vmatpush1.msra.mxu0 0.0
  %1707 = vmatprep.subr.mxu0 0.0
  %1708 = vmatpush1.msra.mxu0 0.0
  %1709 = vmatprep.subr.mxu0 0.0
  %1710 = vmatpush1.msra.mxu0 %v969
  %1711 = vmatprep.subr.mxu0 0.0
  %1712 = vmatpush1.msra.mxu0 %v968
  %1713 = vmatprep.subr.mxu0 0.0
  %1714 = vmatpush1.msra.mxu0 %v967
  %1715 = vmatprep.subr.mxu0 0.0
  %1716 = vmatpush1.msra.mxu0 %v966
  %1717 = vmatprep.subr.mxu0 0.0
  %1718 = vmatpush2.msra.mxu0 0.0
  %1719 = vmatprep.subr.mxu0 0.0
  %1720 = vmatpush2.msra.mxu0 0.0
  %1721 = vmatprep.subr.mxu0 0.0
  %1722 = vmatpush2.msra.mxu0 0.0
  %1723 = vmatprep.subr.mxu0 0.0
  %1724 = vmatpush2.msra.mxu0 0.0
  %1725 = vmatprep.subr.mxu0 0.0
  %1726 = vmatpush2.msra.mxu0 0.0
  %1727 = vmatprep.subr.mxu0 0.0
  %1728 = vmatpush2.msra.mxu0 0.0
  %1729 = vmatprep.subr.mxu0 0.0
  %1730 = vmatpush2.msra.mxu0 0.0
  %1731 = vmatprep.subr.mxu0 0.0
  %1732 = vmatpush2.msra.mxu0 0.0
  %1733 = vmatprep.subr.mxu0 0.0
  %1734 = vmatpush2.msra.mxu0 0.0
  %1735 = vmatprep.subr.mxu0 0.0
  %1736 = vmatpush2.msra.mxu0 0.0
  %1737 = vmatprep.subr.mxu0 0.0
  %1738 = vmatpush2.msra.mxu0 0.0
  %1739 = vmatprep.subr.mxu0 0.0
  %1740 = vmatpush2.msra.mxu0 0.0
  %1741 = vmatprep.subr.mxu0 0.0
  %1742 = vmatpush2.msra.mxu0 0.0
  %1743 = vmatprep.subr.mxu0 0.0
  %1744 = vmatpush2.msra.mxu0 0.0
  %1745 = vmatprep.subr.mxu0 0.0
  %1746 = vmatpush2.msra.mxu0 0.0
  %1747 = vmatprep.subr.mxu0 0.0
  %1748 = vmatpush2.msra.mxu0 0.0
  %1749 = vmatprep.mubr.f32.mxu0 0.0
  %1750 = vmatmul.mubr.f32.gmra.mxu0 %v1683
  %v1751 = vpop.f32.mrf.mxu0
  %v1752 = vadd.f32 0.0, %v1751
  %v1753 = vpop.f32.mrf.mxu0
  %1754 = vdwg.mxu0
  %v1755 = vadd.f32 %v1679, %v1752
  %v1756 = vtanh.pop %v1755
  %v1757 = vxor.u32 %v1755, 2147483648
  %v1758 = vmul.f32 %v1757, 1.442695
  %v1759 = vpow.pop %v1758
  %v1760 = vadd.f32 %v1759, 1.0
  %v1761 = vrcp.pop %v1760
  %v1762 = vmul.f32 1.0, %v1761
  %v1763 = vsel %vm29, %v1756, %v1762
  %v1764 = vmul.f32 %v1763, %v1672
  %1766 = vrot.lane.b32.xlu0 %v1763, 64
  %v1767 = vpop.permute.xlu0 %1766
  %v1769 = vmul.f32 %v1763, %v1767
  %1771 = vrot.lane.b32.xlu0 %v1769, 32
  %v1772 = vpop.permute.xlu0 %1771
  %v1774 = vadd.f32 %v1764, %v1772
  %v1775 = vtanh.pop %v1774
  %1777 = vrot.lane.b32.xlu0 %v1775, 64
  %v1778 = vpop.permute.xlu0 %1777
  %v1780 = vmul.f32 %v1763, %v1778
  %v1781 = vld [vmem:[%s4] sm:$0xff]
  %v1782 = vld [vmem:[%s4 + $0x8] sm:$0xff]
  %v1783 = vld [vmem:[%s4 + $0x10] sm:$0xff]
  %v1784 = vld [vmem:[%s4 + $0x18] sm:$0xff]
  %v1785 = vld [vmem:[#allocation4] sm:$0x1]
  %v1787 = vlaneseq
  %v1788 = vshrl.u32 %v1787, 7
  %v1789 = vsub.s32 0, %v1788
  %v1790 = vrot.slane %v1785, %v1789
  %1793 = vrot.lane.b32.xlu0 %v1780, 32
  %v1794 = vpop.permute.xlu0 %1793
  %v1795 = vsel %vm35, %v1794, 0
  %1797 = vmatprep.subr.mxu0 0.0
  %1798 = vmatpush1.msra.mxu0 0.0
  %1799 = vmatprep.subr.mxu0 0.0
  %1800 = vmatpush1.msra.mxu0 0.0
  %1801 = vmatprep.subr.mxu0 0.0
  %1802 = vmatpush1.msra.mxu0 0.0
  %1803 = vmatprep.subr.mxu0 0.0
  %1804 = vmatpush1.msra.mxu0 0.0
  %1805 = vmatprep.subr.mxu0 0.0
  %1806 = vmatpush1.msra.mxu0 0.0
  %1807 = vmatprep.subr.mxu0 0.0
  %1808 = vmatpush1.msra.mxu0 0.0
  %1809 = vmatprep.subr.mxu0 0.0
  %1810 = vmatpush1.msra.mxu0 0.0
  %1811 = vmatprep.subr.mxu0 0.0
  %1812 = vmatpush1.msra.mxu0 0.0
  %1813 = vmatprep.subr.mxu0 0.0
  %1814 = vmatpush1.msra.mxu0 0.0
  %1815 = vmatprep.subr.mxu0 0.0
  %1816 = vmatpush1.msra.mxu0 0.0
  %1817 = vmatprep.subr.mxu0 0.0
  %1818 = vmatpush1.msra.mxu0 0.0
  %1819 = vmatprep.subr.mxu0 0.0
  %1820 = vmatpush1.msra.mxu0 0.0
  %1821 = vmatprep.subr.mxu0 0.0
  %1822 = vmatpush1.msra.mxu0 %v1784
  %1823 = vmatprep.subr.mxu0 0.0
  %1824 = vmatpush1.msra.mxu0 %v1783
  %1825 = vmatprep.subr.mxu0 0.0
  %1826 = vmatpush1.msra.mxu0 %v1782
  %1827 = vmatprep.subr.mxu0 0.0
  %1828 = vmatpush1.msra.mxu0 %v1781
  %1829 = vmatprep.subr.mxu0 0.0
  %1830 = vmatpush2.msra.mxu0 0.0
  %1831 = vmatprep.subr.mxu0 0.0
  %1832 = vmatpush2.msra.mxu0 0.0
  %1833 = vmatprep.subr.mxu0 0.0
  %1834 = vmatpush2.msra.mxu0 0.0
  %1835 = vmatprep.subr.mxu0 0.0
  %1836 = vmatpush2.msra.mxu0 0.0
  %1837 = vmatprep.subr.mxu0 0.0
  %1838 = vmatpush2.msra.mxu0 0.0
  %1839 = vmatprep.subr.mxu0 0.0
  %1840 = vmatpush2.msra.mxu0 0.0
  %1841 = vmatprep.subr.mxu0 0.0
  %1842 = vmatpush2.msra.mxu0 0.0
  %1843 = vmatprep.subr.mxu0 0.0
  %1844 = vmatpush2.msra.mxu0 0.0
  %1845 = vmatprep.subr.mxu0 0.0
  %1846 = vmatpush2.msra.mxu0 0.0
  %1847 = vmatprep.subr.mxu0 0.0
  %1848 = vmatpush2.msra.mxu0 0.0
  %1849 = vmatprep.subr.mxu0 0.0
  %1850 = vmatpush2.msra.mxu0 0.0
  %1851 = vmatprep.subr.mxu0 0.0
  %1852 = vmatpush2.msra.mxu0 0.0
  %1853 = vmatprep.subr.mxu0 0.0
  %1854 = vmatpush2.msra.mxu0 0.0
  %1855 = vmatprep.subr.mxu0 0.0
  %1856 = vmatpush2.msra.mxu0 0.0
  %1857 = vmatprep.subr.mxu0 0.0
  %1858 = vmatpush2.msra.mxu0 0.0
  %1859 = vmatprep.subr.mxu0 0.0
  %1860 = vmatpush2.msra.mxu0 0.0
  %1861 = vmatprep.mubr.f32.mxu0 0.0
  %1862 = vmatmul.mubr.f32.gmra.mxu0 %v1795
  %v1863 = vpop.f32.mrf.mxu0
  %v1864 = vadd.f32 %v1790, %v1863
  %v1865 = vpop.f32.mrf.mxu0
  %1866 = vdwg.mxu0
  %vm1867 = vcmask 1024
  %1868 = vst.msk [vmem:[%s6] sm:$0x3] %vm1867, %v1864
  // Predicated region
  $region26: #{cpg_predictor_forward.1} parent=0 // pred_check
    _
  $region27: #{cpg_predictor_forward.1} parent=0 // pred_check_branch
    %1870 = sbr.rel (0) target = $region29
  $region28: #{cpg_predictor_forward.1} parent=0 // pred_region
    _
  $region29: #{cpg_predictor_forward.1} parent=0 // pred_fallthru
    _
  // Predicated region
  $region30: #{cpg_predictor_forward.1} parent=0 // pred_check
    _
  $region31: #{cpg_predictor_forward.1} parent=0 // pred_check_branch
    %1872 = sbr.rel (0) target = $region33
  $region32: #{cpg_predictor_forward.1} parent=0 // pred_region
    _
  $region33: #{cpg_predictor_forward.1} parent=0 // pred_fallthru
    _

</llo_original>
